<compile_context>
chip_gen: v5e
topology: v5e:2x2
jax: 0.10.0
libtpu: 0.0.40
codegen_flags: <defaults>
</compile_context>

<pallas_src>
import functools

import jax
import jax.numpy as jnp
import numpy as np
from jax.experimental import pallas as pl
from jax.experimental.pallas import tpu as pltpu


# ---------------------------------------------------------------------------
# Pallas kernel: full AE forward for one (tile_b, isize) batch tile.
# ---------------------------------------------------------------------------
def ae_kernel(x_ref,
              w1_ref, b1_ref, w2_ref, b2_ref, w3_ref, b3_ref,
              w4_ref, b4_ref, w5_ref, b5_ref,
              out_ref):
    f32 = jnp.float32
    dot = functools.partial(jnp.dot, preferred_element_type=f32)
    relu = lambda v: jnp.maximum(v, 0.0)
    wdt = w1_ref.dtype

    isize = x_ref.shape[-1]
    h2, h4 = isize // 2, isize // 4

    x = x_ref[...].astype(wdt)                                  # (tb, isize)

    # dense1 + ReLU + MaxPool1d(2): w1 columns pre-permuted to [even | odd]
    # so the pool is a max of two static half-slices (no select matmuls).
    h1 = relu(dot(x, w1_ref[...]) + b1_ref[...])                # f32 (tb, isize)
    x2p = jnp.maximum(h1[:, :h2], h1[:, h2:])                   # (tb, isize/2)

    # dense2 + ReLU, columns pre-permuted to [even | odd]; both halves feed
    # the second pool AND the residual connection.
    x2 = relu(dot(x2p.astype(wdt), w2_ref[...]) + b2_ref[...])  # (tb, isize/2)
    x3 = jnp.maximum(x2[:, :h4], x2[:, h4:])                    # (tb, isize/4)

    # dense3 + ReLU -> encoded
    enc = relu(dot(x3.astype(wdt), w3_ref[...]) + b3_ref[...])  # (tb, isize/4)

    # Upsample + residual + dense4 + ReLU, fused into ONE K=isize/2 matmul:
    #   (x2 + up(enc)) @ w4.T == [x2e+enc | x2o+enc] @ [w4.T[0::2]; w4.T[1::2]]
    a4 = x2 + jnp.concatenate([enc, enc], axis=-1)              # (tb, isize/2)
    y = relu(dot(a4.astype(wdt), w4_ref[...]) + b4_ref[...])    # (tb, isize/2)

    # Upsample + dense5 + Tanh, upsample folded: w5f = w5.T[0::2] + w5.T[1::2]
    dec = jnp.tanh(dot(y.astype(wdt), w5_ref[...]) + b5_ref[...])  # (tb, isize)

    out_ref[...] = dec.astype(out_ref.dtype)


# ---------------------------------------------------------------------------
# Parameter construction (PyTorch-style Linear init) and one-time folding.
# ---------------------------------------------------------------------------
def linear_params(key, fan_in, fan_out):
    kw, kb = jax.random.split(key)
    bound = 1.0 / np.sqrt(fan_in)
    w = jax.random.uniform(kw, (fan_out, fan_in), jnp.float32, -bound, bound)
    b = jax.random.uniform(kb, (fan_out,), jnp.float32, -bound, bound)
    return w, b


def init_ae_params(key, isize):
    k1, k2, k3, k4, k5 = jax.random.split(key, 5)
    w1, b1 = linear_params(k1, isize, isize)
    w2, b2 = linear_params(k2, isize // 2, isize // 2)
    w3, b3 = linear_params(k3, isize // 4, isize // 4)
    w4, b4 = linear_params(k4, isize // 2, isize // 2)
    w5, b5 = linear_params(k5, isize, isize)
    return dict(w1=w1, b1=b1, w2=w2, b2=b2, w3=w3, b3=b3, w4=w4, b4=b4,
                w5=w5, b5=b5)


def fold_ae_params(params, *, weight_dtype=jnp.bfloat16):
    """One-time algebraic folding of pool/upsample into the dense weights.

    All folds are exact identities: ReLU commutes with column selection, and
    the nearest-neighbour upsample matrix is 0/1 so it folds into row sums /
    row stacks. Weights are cast to `weight_dtype` (bf16 default: native MXU
    input, halves resident VMEM + HBM traffic); biases stay f32 because they
    are added on the f32 accumulator path.
    """
    w1t, w2t = params["w1"].T, params["w2"].T
    w4t, w5t = params["w4"].T, params["w5"].T
    # dense1/dense2: permute output columns to [even | odd] -> one full-width
    # matmul each; MaxPool1d(2) becomes a max of two static half-slices.
    w1p = jnp.concatenate([w1t[:, 0::2], w1t[:, 1::2]], axis=1)
    b1p = jnp.concatenate([params["b1"][0::2], params["b1"][1::2]])[None, :]
    w2p = jnp.concatenate([w2t[:, 0::2], w2t[:, 1::2]], axis=1)
    b2p = jnp.concatenate([params["b2"][0::2], params["b2"][1::2]])[None, :]
    w3t = params["w3"].T
    b3 = params["b3"][None, :]
    # dense4: upsample folded into rows; rows stacked [even ; odd] along K to
    # match the kernel's [x2_even+enc | x2_odd+enc] activation layout.
    w4s = jnp.concatenate([w4t[0::2, :], w4t[1::2, :]], axis=0)
    b4 = params["b4"][None, :]
    # dense5: upsample folded by summing even/odd rows (halves K of the
    # largest matmul).
    w5f = w5t[0::2, :] + w5t[1::2, :]
    b5 = params["b5"][None, :]

    ws = [w.astype(weight_dtype) for w in (w1p, w2p, w3t, w4s, w5f)]
    bs = [b.astype(jnp.float32) for b in (b1p, b2p, b3, b4, b5)]
    return tuple(v for pair in zip(ws, bs) for v in pair)


# ---------------------------------------------------------------------------
# Wrapper: batch streaming + VMEM budgeting + pallas_call.
# ---------------------------------------------------------------------------
def _vmem_capacity_bytes():
    """Physical per-core VMEM, with a conservative (v7x) fallback."""
    try:
        cap = int(getattr(pltpu.get_tpu_info(), "vmem_capacity_bytes", 0))
        if cap > 0:
            return cap
    except Exception:
        pass
    return 64 << 20   # v7x per-TensorCore VMEM (smallest of v5e/v6e/v7x)


def ae_forward(x, folded_params, *, tile_b=None, single_buffer_weights=True):
    B, isize = x.shape
    assert isize % 4 == 0, "input size has to be a multiple of 4"

    w_dtype = folded_params[0].dtype
    # Stream x in the matmul dtype (bf16 by default) to halve input HBM bytes.
    x = x.astype(w_dtype)
    sub = 16 if w_dtype == jnp.bfloat16 else 8     # sublane quantum

    # ---- VMEM budget: per-generation cap via get_tpu_info, 15% headroom ----
    usable = int(0.85 * _vmem_capacity_bytes())    # ~54 MiB v7x, ~109 MiB v6e
    w_bytes = sum(int(np.prod(a.shape)) * a.dtype.itemsize
                  for a in folded_params)
    w_resident = w_bytes if single_buffer_weights else 2 * w_bytes
    # Per batch-row bytes: double-buffered x/out tiles + live f32 activations.
    per_row = (2 * (x.dtype.itemsize + 4) + 32) * isize
    if w_resident + sub * per_row > usable:
        # TODO(synk): add a weight-tiling grid axis (stream dense1/dense5 in
        # K/N chunks) once folded weights overflow VMEM (very large isize).
        raise NotImplementedError(
            f"folded weights ({w_bytes / 2**20:.1f} MiB) do not fit the "
            f"weight-resident design within {usable / 2**20:.1f} MiB of VMEM")

    # ---- batch tile selection ----------------------------------------------
    if tile_b is None:
        tile_b = min(512, max(sub, (usable - w_resident) // per_row))
    tile_b = max(sub, (int(tile_b) // sub) * sub)
    # Guarantee >= 2 grid steps when the batch allows it, so the "parallel"
    # batch axis can shard across v7x's two TensorCores (harmless on v5e/v6e).
    if B >= 2 * sub:
        half = (((B + 1) // 2) + sub - 1) // sub * sub
        tile_b = min(tile_b, half)
    tile_b = min(tile_b, ((B + sub - 1) // sub) * sub)
    Bp = ((B + tile_b - 1) // tile_b) * tile_b
    xp = x if Bp == B else jnp.pad(x, ((0, Bp - B), (0, 0)))
    grid = (Bp // tile_b,)

    vmem_limit = int(min(usable,
                         max(32 << 20, 2 * w_bytes + 3 * tile_b * per_row)))

    x_spec = pl.BlockSpec((tile_b, isize), lambda i: (i, 0))
    out_spec = pl.BlockSpec((tile_b, isize), lambda i: (i, 0))
    # TODO(synk): emit bf16 output if downstream tolerates it (halves output
    # writeback HBM bytes); kept f32 to preserve the module's output dtype.
    out_shape = jax.ShapeDtypeStruct((Bp, isize), jnp.float32)

    def run(single_buffer):
        w_specs = []
        for a in folded_params:
            kwargs = {}
            if single_buffer:
                # Constant index_map -> block never changes; one VMEM buffer
                # suffices (halves resident weight VMEM vs double-buffering).
                kwargs["pipeline_mode"] = pl.Buffered(1)
            w_specs.append(pl.BlockSpec(a.shape, lambda i: (0, 0), **kwargs))
        return pl.pallas_call(
            ae_kernel,
            out_shape=out_shape,
            grid=grid,
            in_specs=[x_spec] + w_specs,
            out_specs=out_spec,
            compiler_params=pltpu.CompilerParams(
                dimension_semantics=("parallel",),
                vmem_limit_bytes=vmem_limit),
        )(xp, *folded_params)

    if single_buffer_weights:
        try:
            out = run(True)
            out.block_until_ready()
            return out[:B]
        except Exception:
            pass  # jax without Buffered(1) support: fall back to default specs
    return run(False)[:B]


# ---------------------------------------------------------------------------
# Pure-JAX reference (mirrors the PyTorch forward exactly, all f32).
# ---------------------------------------------------------------------------
def ae_reference(x, params):
    def lin(v, w, b):
        return v @ w.T + b

    x1 = jax.nn.relu(lin(x, params["w1"], params["b1"]))
    x2 = jnp.max(x1.reshape(x1.shape[0], -1, 2), axis=-1)          # MaxPool1d(2)
    x2 = jax.nn.relu(lin(x2, params["w2"], params["b2"]))
    x3 = jnp.max(x2.reshape(x2.shape[0], -1, 2), axis=-1)          # MaxPool1d(2)
    enc = jax.nn.relu(lin(x3, params["w3"], params["b3"]))
    y = x2 + jnp.repeat(enc, 2, axis=-1)                           # Upsample(2)
    y = jax.nn.relu(lin(y, params["w4"], params["b4"]))
    y = jnp.repeat(y, 2, axis=-1)                                  # Upsample(2)
    return jnp.tanh(lin(y, params["w5"], params["b5"]))


# ---------------------------------------------------------------------------
if __name__ == "__main__":
    # Small but MXU/lane-aligned; B=48 exercises batch padding and >=2 grid
    # steps (the v7x dual-TensorCore path).
    B, ISIZE = 48, 128

    key = jax.random.PRNGKey(0)
    kx, kp = jax.random.split(key)
    x = jax.random.normal(kx, (B, ISIZE), jnp.float32)
    params = init_ae_params(kp, ISIZE)

    ref = ae_reference(x, params)

    # 1) f32 weights: validates that the pool/upsample folds are exact.
    folded_f32 = fold_ae_params(params, weight_dtype=jnp.float32)
    out_f32 = jax.block_until_ready(ae_forward(x, folded_f32))
    np.testing.assert_allclose(np.asarray(out_f32), np.asarray(ref),
                               rtol=1e-3, atol=1e-3)

    # 2) bf16 weights/activations (default fast path), f32 MXU accumulation.
    folded_bf16 = fold_ae_params(params)
    out_bf16 = jax.block_until_ready(ae_forward(x, folded_bf16))
    np.testing.assert_allclose(np.asarray(out_bf16), np.asarray(ref),
                               rtol=3e-2, atol=3e-2)

    print("KERNEL_OK")
</pallas_src>

<mosaic_0001>
module attributes {stable_mosaic.version = 11 : i64} {
  func.func @ae_kernel(%arg0: i32, %arg1: memref<24x128xf32, #tpu.memory_space<vmem>>, %arg2: memref<128x128xf32, #tpu.memory_space<vmem>>, %arg3: memref<1x128xf32, #tpu.memory_space<vmem>>, %arg4: memref<64x64xf32, #tpu.memory_space<vmem>>, %arg5: memref<1x64xf32, #tpu.memory_space<vmem>>, %arg6: memref<32x32xf32, #tpu.memory_space<vmem>>, %arg7: memref<1x32xf32, #tpu.memory_space<vmem>>, %arg8: memref<64x64xf32, #tpu.memory_space<vmem>>, %arg9: memref<1x64xf32, #tpu.memory_space<vmem>>, %arg10: memref<64x128xf32, #tpu.memory_space<vmem>>, %arg11: memref<1x128xf32, #tpu.memory_space<vmem>>, %arg12: memref<24x128xf32, #tpu.memory_space<vmem>>) attributes {dimension_semantics = [#tpu.dimension_semantics<parallel>], iteration_bounds = array<i64: 2>, scalar_prefetch = 0 : i64, scratch_operands = 0 : i64, tpu.core_type = #tpu.core_type<tc>, window_params = [{transform_indices = @transform_0, window_bounds = array<i64: 24, 128>}, {pipeline_mode = #tpu.pipeline_mode<synchronous>, transform_indices = @transform_1, window_bounds = array<i64: 128, 128>}, {pipeline_mode = #tpu.pipeline_mode<synchronous>, transform_indices = @transform_2, window_bounds = array<i64: 1, 128>}, {pipeline_mode = #tpu.pipeline_mode<synchronous>, transform_indices = @transform_3, window_bounds = array<i64: 64, 64>}, {pipeline_mode = #tpu.pipeline_mode<synchronous>, transform_indices = @transform_4, window_bounds = array<i64: 1, 64>}, {pipeline_mode = #tpu.pipeline_mode<synchronous>, transform_indices = @transform_5, window_bounds = array<i64: 32, 32>}, {pipeline_mode = #tpu.pipeline_mode<synchronous>, transform_indices = @transform_6, window_bounds = array<i64: 1, 32>}, {pipeline_mode = #tpu.pipeline_mode<synchronous>, transform_indices = @transform_7, window_bounds = array<i64: 64, 64>}, {pipeline_mode = #tpu.pipeline_mode<synchronous>, transform_indices = @transform_8, window_bounds = array<i64: 1, 64>}, {pipeline_mode = #tpu.pipeline_mode<synchronous>, transform_indices = @transform_9, window_bounds = array<i64: 64, 128>}, {pipeline_mode = #tpu.pipeline_mode<synchronous>, transform_indices = @transform_10, window_bounds = array<i64: 1, 128>}, {transform_indices = @transform_11, window_bounds = array<i64: 24, 128>}]} {
    %c0 = arith.constant 0 : index
    %c0_0 = arith.constant 0 : index
    %0 = vector.load %arg1[%c0, %c0_0] : memref<24x128xf32, #tpu.memory_space<vmem>>, vector<24x128xf32>
    %c0_1 = arith.constant 0 : index
    %c0_2 = arith.constant 0 : index
    %1 = vector.load %arg2[%c0_1, %c0_2] : memref<128x128xf32, #tpu.memory_space<vmem>>, vector<128x128xf32>
    %cst = arith.constant dense<0.000000e+00> : vector<24x128xf32>
    %2 = tpu.matmul %0, %1, %cst {dimension_numbers = #tpu.dot_dimension_numbers<[1], [0], [0], [1], [0, 0, 1, 1], [], []>} : vector<24x128xf32>, vector<128x128xf32>, vector<24x128xf32> -> vector<24x128xf32>
    %c0_3 = arith.constant 0 : index
    %c0_4 = arith.constant 0 : index
    %3 = vector.load %arg3[%c0_3, %c0_4] : memref<1x128xf32, #tpu.memory_space<vmem>>, vector<1x128xf32>
    %4 = vector.broadcast %3 : vector<1x128xf32> to vector<24x128xf32>
    %5 = arith.addf %2, %4 : vector<24x128xf32>
    %cst_5 = arith.constant 0.000000e+00 : f32
    %6 = vector.broadcast %cst_5 : f32 to vector<24x128xf32>
    %7 = arith.maximumf %5, %6 : vector<24x128xf32>
    %8 = vector.extract_strided_slice %7 {offsets = [0, 0], sizes = [24, 64], strides = [1, 1]} : vector<24x128xf32> to vector<24x64xf32>
    %9 = vector.extract_strided_slice %7 {offsets = [0, 64], sizes = [24, 64], strides = [1, 1]} : vector<24x128xf32> to vector<24x64xf32>
    %10 = arith.maximumf %8, %9 : vector<24x64xf32>
    %c0_6 = arith.constant 0 : index
    %c0_7 = arith.constant 0 : index
    %11 = vector.load %arg4[%c0_6, %c0_7] : memref<64x64xf32, #tpu.memory_space<vmem>>, vector<64x64xf32>
    %cst_8 = arith.constant dense<0.000000e+00> : vector<24x64xf32>
    %12 = tpu.matmul %10, %11, %cst_8 {dimension_numbers = #tpu.dot_dimension_numbers<[1], [0], [0], [1], [0, 0, 1, 1], [], []>} : vector<24x64xf32>, vector<64x64xf32>, vector<24x64xf32> -> vector<24x64xf32>
    %c0_9 = arith.constant 0 : index
    %c0_10 = arith.constant 0 : index
    %13 = vector.load %arg5[%c0_9, %c0_10] : memref<1x64xf32, #tpu.memory_space<vmem>>, vector<1x64xf32>
    %14 = vector.broadcast %13 : vector<1x64xf32> to vector<24x64xf32>
    %15 = arith.addf %12, %14 : vector<24x64xf32>
    %cst_11 = arith.constant 0.000000e+00 : f32
    %16 = vector.broadcast %cst_11 : f32 to vector<24x64xf32>
    %17 = arith.maximumf %15, %16 : vector<24x64xf32>
    %18 = vector.extract_strided_slice %17 {offsets = [0, 0], sizes = [24, 32], strides = [1, 1]} : vector<24x64xf32> to vector<24x32xf32>
    %19 = vector.extract_strided_slice %17 {offsets = [0, 32], sizes = [24, 32], strides = [1, 1]} : vector<24x64xf32> to vector<24x32xf32>
    %20 = arith.maximumf %18, %19 : vector<24x32xf32>
    %c0_12 = arith.constant 0 : index
    %c0_13 = arith.constant 0 : index
    %21 = vector.load %arg6[%c0_12, %c0_13] : memref<32x32xf32, #tpu.memory_space<vmem>>, vector<32x32xf32>
    %cst_14 = arith.constant dense<0.000000e+00> : vector<24x32xf32>
    %22 = tpu.matmul %20, %21, %cst_14 {dimension_numbers = #tpu.dot_dimension_numbers<[1], [0], [0], [1], [0, 0, 1, 1], [], []>} : vector<24x32xf32>, vector<32x32xf32>, vector<24x32xf32> -> vector<24x32xf32>
    %c0_15 = arith.constant 0 : index
    %c0_16 = arith.constant 0 : index
    %23 = vector.load %arg7[%c0_15, %c0_16] : memref<1x32xf32, #tpu.memory_space<vmem>>, vector<1x32xf32>
    %24 = vector.broadcast %23 : vector<1x32xf32> to vector<24x32xf32>
    %25 = arith.addf %22, %24 : vector<24x32xf32>
    %cst_17 = arith.constant 0.000000e+00 : f32
    %26 = vector.broadcast %cst_17 : f32 to vector<24x32xf32>
    %27 = arith.maximumf %25, %26 : vector<24x32xf32>
    %28 = tpu.concatenate %27, %27 in 1 : vector<24x32xf32>, vector<24x32xf32> -> vector<24x64xf32>
    %29 = arith.addf %17, %28 : vector<24x64xf32>
    %c0_18 = arith.constant 0 : index
    %c0_19 = arith.constant 0 : index
    %30 = vector.load %arg8[%c0_18, %c0_19] : memref<64x64xf32, #tpu.memory_space<vmem>>, vector<64x64xf32>
    %cst_20 = arith.constant dense<0.000000e+00> : vector<24x64xf32>
    %31 = tpu.matmul %29, %30, %cst_20 {dimension_numbers = #tpu.dot_dimension_numbers<[1], [0], [0], [1], [0, 0, 1, 1], [], []>} : vector<24x64xf32>, vector<64x64xf32>, vector<24x64xf32> -> vector<24x64xf32>
    %c0_21 = arith.constant 0 : index
    %c0_22 = arith.constant 0 : index
    %32 = vector.load %arg9[%c0_21, %c0_22] : memref<1x64xf32, #tpu.memory_space<vmem>>, vector<1x64xf32>
    %33 = vector.broadcast %32 : vector<1x64xf32> to vector<24x64xf32>
    %34 = arith.addf %31, %33 : vector<24x64xf32>
    %cst_23 = arith.constant 0.000000e+00 : f32
    %35 = vector.broadcast %cst_23 : f32 to vector<24x64xf32>
    %36 = arith.maximumf %34, %35 : vector<24x64xf32>
    %c0_24 = arith.constant 0 : index
    %c0_25 = arith.constant 0 : index
    %37 = vector.load %arg10[%c0_24, %c0_25] : memref<64x128xf32, #tpu.memory_space<vmem>>, vector<64x128xf32>
    %cst_26 = arith.constant dense<0.000000e+00> : vector<24x128xf32>
    %38 = tpu.matmul %36, %37, %cst_26 {dimension_numbers = #tpu.dot_dimension_numbers<[1], [0], [0], [1], [0, 0, 1, 1], [], []>} : vector<24x64xf32>, vector<64x128xf32>, vector<24x128xf32> -> vector<24x128xf32>
    %c0_27 = arith.constant 0 : index
    %c0_28 = arith.constant 0 : index
    %39 = vector.load %arg11[%c0_27, %c0_28] : memref<1x128xf32, #tpu.memory_space<vmem>>, vector<1x128xf32>
    %40 = vector.broadcast %39 : vector<1x128xf32> to vector<24x128xf32>
    %41 = arith.addf %38, %40 : vector<24x128xf32>
    %42 = math.tanh %41 : vector<24x128xf32>
    %c0_29 = arith.constant 0 : index
    %c0_30 = arith.constant 0 : index
    %43 = vector.load %arg12[%c0_29, %c0_30] : memref<24x128xf32, #tpu.memory_space<vmem>>, vector<24x128xf32>
    tpu.vector_store %arg12[%c0_29, %c0_30], %42 {strides = array<i32>} : memref<24x128xf32, #tpu.memory_space<vmem>>, vector<24x128xf32>,
    return
  }
  func.func @transform_0(%arg0: i32) -> (i32, i32) {
    %c0_i32 = arith.constant 0 : i32
    %c0_i32_0 = arith.constant 0 : i32
    return %arg0, %c0_i32 : i32, i32
  }
  func.func @transform_1(%arg0: i32) -> (i32, i32) {
    %c0_i32 = arith.constant 0 : i32
    %c0_i32_0 = arith.constant 0 : i32
    %c0_i32_1 = arith.constant 0 : i32
    return %c0_i32, %c0_i32_0 : i32, i32
  }
  func.func @transform_2(%arg0: i32) -> (i32, i32) {
    %c0_i32 = arith.constant 0 : i32
    %c0_i32_0 = arith.constant 0 : i32
    %c0_i32_1 = arith.constant 0 : i32
    return %c0_i32, %c0_i32_0 : i32, i32
  }
  func.func @transform_3(%arg0: i32) -> (i32, i32) {
    %c0_i32 = arith.constant 0 : i32
    %c0_i32_0 = arith.constant 0 : i32
    %c0_i32_1 = arith.constant 0 : i32
    return %c0_i32, %c0_i32_0 : i32, i32
  }
  func.func @transform_4(%arg0: i32) -> (i32, i32) {
    %c0_i32 = arith.constant 0 : i32
    %c0_i32_0 = arith.constant 0 : i32
    %c0_i32_1 = arith.constant 0 : i32
    return %c0_i32, %c0_i32_0 : i32, i32
  }
  func.func @transform_5(%arg0: i32) -> (i32, i32) {
    %c0_i32 = arith.constant 0 : i32
    %c0_i32_0 = arith.constant 0 : i32
    %c0_i32_1 = arith.constant 0 : i32
    return %c0_i32, %c0_i32_0 : i32, i32
  }
  func.func @transform_6(%arg0: i32) -> (i32, i32) {
    %c0_i32 = arith.constant 0 : i32
    %c0_i32_0 = arith.constant 0 : i32
    %c0_i32_1 = arith.constant 0 : i32
    return %c0_i32, %c0_i32_0 : i32, i32
  }
  func.func @transform_7(%arg0: i32) -> (i32, i32) {
    %c0_i32 = arith.constant 0 : i32
    %c0_i32_0 = arith.constant 0 : i32
    %c0_i32_1 = arith.constant 0 : i32
    return %c0_i32, %c0_i32_0 : i32, i32
  }
  func.func @transform_8(%arg0: i32) -> (i32, i32) {
    %c0_i32 = arith.constant 0 : i32
    %c0_i32_0 = arith.constant 0 : i32
    %c0_i32_1 = arith.constant 0 : i32
    return %c0_i32, %c0_i32_0 : i32, i32
  }
  func.func @transform_9(%arg0: i32) -> (i32, i32) {
    %c0_i32 = arith.constant 0 : i32
    %c0_i32_0 = arith.constant 0 : i32
    %c0_i32_1 = arith.constant 0 : i32
    return %c0_i32, %c0_i32_0 : i32, i32
  }
  func.func @transform_10(%arg0: i32) -> (i32, i32) {
    %c0_i32 = arith.constant 0 : i32
    %c0_i32_0 = arith.constant 0 : i32
    %c0_i32_1 = arith.constant 0 : i32
    return %c0_i32, %c0_i32_0 : i32, i32
  }
  func.func @transform_11(%arg0: i32) -> (i32, i32) {
    %c0_i32 = arith.constant 0 : i32
    %c0_i32_0 = arith.constant 0 : i32
    return %arg0, %c0_i32 : i32, i32
  }
}

module attributes {stable_mosaic.version = 11 : i64} {
  func.func @ae_kernel(%arg0: i32, %arg1: memref<24x128xf32, #tpu.memory_space<vmem>>, %arg2: memref<128x128xf32, #tpu.memory_space<vmem>>, %arg3: memref<1x128xf32, #tpu.memory_space<vmem>>, %arg4: memref<64x64xf32, #tpu.memory_space<vmem>>, %arg5: memref<1x64xf32, #tpu.memory_space<vmem>>, %arg6: memref<32x32xf32, #tpu.memory_space<vmem>>, %arg7: memref<1x32xf32, #tpu.memory_space<vmem>>, %arg8: memref<64x64xf32, #tpu.memory_space<vmem>>, %arg9: memref<1x64xf32, #tpu.memory_space<vmem>>, %arg10: memref<64x128xf32, #tpu.memory_space<vmem>>, %arg11: memref<1x128xf32, #tpu.memory_space<vmem>>, %arg12: memref<24x128xf32, #tpu.memory_space<vmem>>) attributes {dimension_semantics = [#tpu.dimension_semantics<parallel>], iteration_bounds = array<i64: 2>, scalar_prefetch = 0 : i64, scratch_operands = 0 : i64, tpu.core_type = #tpu.core_type<tc>, window_params = [{transform_indices = @transform_0, window_bounds = array<i64: 24, 128>}, {pipeline_mode = #tpu.pipeline_mode<synchronous>, transform_indices = @transform_1, window_bounds = array<i64: 128, 128>}, {pipeline_mode = #tpu.pipeline_mode<synchronous>, transform_indices = @transform_2, window_bounds = array<i64: 1, 128>}, {pipeline_mode = #tpu.pipeline_mode<synchronous>, transform_indices = @transform_3, window_bounds = array<i64: 64, 64>}, {pipeline_mode = #tpu.pipeline_mode<synchronous>, transform_indices = @transform_4, window_bounds = array<i64: 1, 64>}, {pipeline_mode = #tpu.pipeline_mode<synchronous>, transform_indices = @transform_5, window_bounds = array<i64: 32, 32>}, {pipeline_mode = #tpu.pipeline_mode<synchronous>, transform_indices = @transform_6, window_bounds = array<i64: 1, 32>}, {pipeline_mode = #tpu.pipeline_mode<synchronous>, transform_indices = @transform_7, window_bounds = array<i64: 64, 64>}, {pipeline_mode = #tpu.pipeline_mode<synchronous>, transform_indices = @transform_8, window_bounds = array<i64: 1, 64>}, {pipeline_mode = #tpu.pipeline_mode<synchronous>, transform_indices = @transform_9, window_bounds = array<i64: 64, 128>}, {pipeline_mode = #tpu.pipeline_mode<synchronous>, transform_indices = @transform_10, window_bounds = array<i64: 1, 128>}, {transform_indices = @transform_11, window_bounds = array<i64: 24, 128>}]} {
    %c0 = arith.constant 0 : index
    %c0_0 = arith.constant 0 : index
    %0 = vector.load %arg1[%c0, %c0_0] : memref<24x128xf32, #tpu.memory_space<vmem>>, vector<24x128xf32>
    %c0_1 = arith.constant 0 : index
    %c0_2 = arith.constant 0 : index
    %1 = vector.load %arg2[%c0_1, %c0_2] : memref<128x128xf32, #tpu.memory_space<vmem>>, vector<128x128xf32>
    %cst = arith.constant dense<0.000000e+00> : vector<24x128xf32>
    %2 = tpu.matmul %0, %1, %cst {dimension_numbers = #tpu.dot_dimension_numbers<[1], [0], [0], [1], [0, 0, 1, 1], [], []>} : vector<24x128xf32>, vector<128x128xf32>, vector<24x128xf32> -> vector<24x128xf32>
    %c0_3 = arith.constant 0 : index
    %c0_4 = arith.constant 0 : index
    %3 = vector.load %arg3[%c0_3, %c0_4] : memref<1x128xf32, #tpu.memory_space<vmem>>, vector<1x128xf32>
    %4 = vector.broadcast %3 : vector<1x128xf32> to vector<24x128xf32>
    %5 = arith.addf %2, %4 : vector<24x128xf32>
    %cst_5 = arith.constant 0.000000e+00 : f32
    %6 = vector.broadcast %cst_5 : f32 to vector<24x128xf32>
    %7 = arith.maximumf %5, %6 : vector<24x128xf32>
    %8 = vector.extract_strided_slice %7 {offsets = [0, 0], sizes = [24, 64], strides = [1, 1]} : vector<24x128xf32> to vector<24x64xf32>
    %9 = vector.extract_strided_slice %7 {offsets = [0, 64], sizes = [24, 64], strides = [1, 1]} : vector<24x128xf32> to vector<24x64xf32>
    %10 = arith.maximumf %8, %9 : vector<24x64xf32>
    %c0_6 = arith.constant 0 : index
    %c0_7 = arith.constant 0 : index
    %11 = vector.load %arg4[%c0_6, %c0_7] : memref<64x64xf32, #tpu.memory_space<vmem>>, vector<64x64xf32>
    %cst_8 = arith.constant dense<0.000000e+00> : vector<24x64xf32>
    %12 = tpu.matmul %10, %11, %cst_8 {dimension_numbers = #tpu.dot_dimension_numbers<[1], [0], [0], [1], [0, 0, 1, 1], [], []>} : vector<24x64xf32>, vector<64x64xf32>, vector<24x64xf32> -> vector<24x64xf32>
    %c0_9 = arith.constant 0 : index
    %c0_10 = arith.constant 0 : index
    %13 = vector.load %arg5[%c0_9, %c0_10] : memref<1x64xf32, #tpu.memory_space<vmem>>, vector<1x64xf32>
    %14 = vector.broadcast %13 : vector<1x64xf32> to vector<24x64xf32>
    %15 = arith.addf %12, %14 : vector<24x64xf32>
    %cst_11 = arith.constant 0.000000e+00 : f32
    %16 = vector.broadcast %cst_11 : f32 to vector<24x64xf32>
    %17 = arith.maximumf %15, %16 : vector<24x64xf32>
    %18 = vector.extract_strided_slice %17 {offsets = [0, 0], sizes = [24, 32], strides = [1, 1]} : vector<24x64xf32> to vector<24x32xf32>
    %19 = vector.extract_strided_slice %17 {offsets = [0, 32], sizes = [24, 32], strides = [1, 1]} : vector<24x64xf32> to vector<24x32xf32>
    %20 = arith.maximumf %18, %19 : vector<24x32xf32>
    %c0_12 = arith.constant 0 : index
    %c0_13 = arith.constant 0 : index
    %21 = vector.load %arg6[%c0_12, %c0_13] : memref<32x32xf32, #tpu.memory_space<vmem>>, vector<32x32xf32>
    %cst_14 = arith.constant dense<0.000000e+00> : vector<24x32xf32>
    %22 = tpu.matmul %20, %21, %cst_14 {dimension_numbers = #tpu.dot_dimension_numbers<[1], [0], [0], [1], [0, 0, 1, 1], [], []>} : vector<24x32xf32>, vector<32x32xf32>, vector<24x32xf32> -> vector<24x32xf32>
    %c0_15 = arith.constant 0 : index
    %c0_16 = arith.constant 0 : index
    %23 = vector.load %arg7[%c0_15, %c0_16] : memref<1x32xf32, #tpu.memory_space<vmem>>, vector<1x32xf32>
    %24 = vector.broadcast %23 : vector<1x32xf32> to vector<24x32xf32>
    %25 = arith.addf %22, %24 : vector<24x32xf32>
    %cst_17 = arith.constant 0.000000e+00 : f32
    %26 = vector.broadcast %cst_17 : f32 to vector<24x32xf32>
    %27 = arith.maximumf %25, %26 : vector<24x32xf32>
    %28 = tpu.concatenate %27, %27 in 1 : vector<24x32xf32>, vector<24x32xf32> -> vector<24x64xf32>
    %29 = arith.addf %17, %28 : vector<24x64xf32>
    %c0_18 = arith.constant 0 : index
    %c0_19 = arith.constant 0 : index
    %30 = vector.load %arg8[%c0_18, %c0_19] : memref<64x64xf32, #tpu.memory_space<vmem>>, vector<64x64xf32>
    %cst_20 = arith.constant dense<0.000000e+00> : vector<24x64xf32>
    %31 = tpu.matmul %29, %30, %cst_20 {dimension_numbers = #tpu.dot_dimension_numbers<[1], [0], [0], [1], [0, 0, 1, 1], [], []>} : vector<24x64xf32>, vector<64x64xf32>, vector<24x64xf32> -> vector<24x64xf32>
    %c0_21 = arith.constant 0 : index
    %c0_22 = arith.constant 0 : index
    %32 = vector.load %arg9[%c0_21, %c0_22] : memref<1x64xf32, #tpu.memory_space<vmem>>, vector<1x64xf32>
    %33 = vector.broadcast %32 : vector<1x64xf32> to vector<24x64xf32>
    %34 = arith.addf %31, %33 : vector<24x64xf32>
    %cst_23 = arith.constant 0.000000e+00 : f32
    %35 = vector.broadcast %cst_23 : f32 to vector<24x64xf32>
    %36 = arith.maximumf %34, %35 : vector<24x64xf32>
    %c0_24 = arith.constant 0 : index
    %c0_25 = arith.constant 0 : index
    %37 = vector.load %arg10[%c0_24, %c0_25] : memref<64x128xf32, #tpu.memory_space<vmem>>, vector<64x128xf32>
    %cst_26 = arith.constant dense<0.000000e+00> : vector<24x128xf32>
    %38 = tpu.matmul %36, %37, %cst_26 {dimension_numbers = #tpu.dot_dimension_numbers<[1], [0], [0], [1], [0, 0, 1, 1], [], []>} : vector<24x64xf32>, vector<64x128xf32>, vector<24x128xf32> -> vector<24x128xf32>
    %c0_27 = arith.constant 0 : index
    %c0_28 = arith.constant 0 : index
    %39 = vector.load %arg11[%c0_27, %c0_28] : memref<1x128xf32, #tpu.memory_space<vmem>>, vector<1x128xf32>
    %40 = vector.broadcast %39 : vector<1x128xf32> to vector<24x128xf32>
    %41 = arith.addf %38, %40 : vector<24x128xf32>
    %42 = math.tanh %41 : vector<24x128xf32>
    %c0_29 = arith.constant 0 : index
    %c0_30 = arith.constant 0 : index
    %43 = vector.load %arg12[%c0_29, %c0_30] : memref<24x128xf32, #tpu.memory_space<vmem>>, vector<24x128xf32>
    tpu.vector_store %arg12[%c0_29, %c0_30], %42 {strides = array<i32>} : memref<24x128xf32, #tpu.memory_space<vmem>>, vector<24x128xf32>,
    return
  }
  func.func @transform_0(%arg0: i32) -> (i32, i32) {
    %c0_i32 = arith.constant 0 : i32
    %c0_i32_0 = arith.constant 0 : i32
    return %arg0, %c0_i32 : i32, i32
  }
  func.func @transform_1(%arg0: i32) -> (i32, i32) {
    %c0_i32 = arith.constant 0 : i32
    %c0_i32_0 = arith.constant 0 : i32
    %c0_i32_1 = arith.constant 0 : i32
    return %c0_i32, %c0_i32_0 : i32, i32
  }
  func.func @transform_2(%arg0: i32) -> (i32, i32) {
    %c0_i32 = arith.constant 0 : i32
    %c0_i32_0 = arith.constant 0 : i32
    %c0_i32_1 = arith.constant 0 : i32
    return %c0_i32, %c0_i32_0 : i32, i32
  }
  func.func @transform_3(%arg0: i32) -> (i32, i32) {
    %c0_i32 = arith.constant 0 : i32
    %c0_i32_0 = arith.constant 0 : i32
    %c0_i32_1 = arith.constant 0 : i32
    return %c0_i32, %c0_i32_0 : i32, i32
  }
  func.func @transform_4(%arg0: i32) -> (i32, i32) {
    %c0_i32 = arith.constant 0 : i32
    %c0_i32_0 = arith.constant 0 : i32
    %c0_i32_1 = arith.constant 0 : i32
    return %c0_i32, %c0_i32_0 : i32, i32
  }
  func.func @transform_5(%arg0: i32) -> (i32, i32) {
    %c0_i32 = arith.constant 0 : i32
    %c0_i32_0 = arith.constant 0 : i32
    %c0_i32_1 = arith.constant 0 : i32
    return %c0_i32, %c0_i32_0 : i32, i32
  }
  func.func @transform_6(%arg0: i32) -> (i32, i32) {
    %c0_i32 = arith.constant 0 : i32
    %c0_i32_0 = arith.constant 0 : i32
    %c0_i32_1 = arith.constant 0 : i32
    return %c0_i32, %c0_i32_0 : i32, i32
  }
  func.func @transform_7(%arg0: i32) -> (i32, i32) {
    %c0_i32 = arith.constant 0 : i32
    %c0_i32_0 = arith.constant 0 : i32
    %c0_i32_1 = arith.constant 0 : i32
    return %c0_i32, %c0_i32_0 : i32, i32
  }
  func.func @transform_8(%arg0: i32) -> (i32, i32) {
    %c0_i32 = arith.constant 0 : i32
    %c0_i32_0 = arith.constant 0 : i32
    %c0_i32_1 = arith.constant 0 : i32
    return %c0_i32, %c0_i32_0 : i32, i32
  }
  func.func @transform_9(%arg0: i32) -> (i32, i32) {
    %c0_i32 = arith.constant 0 : i32
    %c0_i32_0 = arith.constant 0 : i32
    %c0_i32_1 = arith.constant 0 : i32
    return %c0_i32, %c0_i32_0 : i32, i32
  }
  func.func @transform_10(%arg0: i32) -> (i32, i32) {
    %c0_i32 = arith.constant 0 : i32
    %c0_i32_0 = arith.constant 0 : i32
    %c0_i32_1 = arith.constant 0 : i32
    return %c0_i32, %c0_i32_0 : i32, i32
  }
  func.func @transform_11(%arg0: i32) -> (i32, i32) {
    %c0_i32 = arith.constant 0 : i32
    %c0_i32_0 = arith.constant 0 : i32
    return %arg0, %c0_i32 : i32, i32
  }
}

</mosaic_0001>

<llo_original>
// kernel: tpu_custom_call.1
$region0: #{tpu_custom_call.1}
  #allocation0 [shape = 'u32[]', space=smem, size = 0x4, offset = 0x4, fixed_abs, tag = 'smem constant byte address 0x4 - core index']
  #allocation1 [shape = 'u32[72,128]{1,0:T(1,128)}', space=vmem, size = 0x9000, scoped, tag = 'internal scratch']
  %s0 = inlined_call_operand.hbm [shape: f32[48,128], index: 0, kind: input, shape index: {}]
  %s1 = inlined_call_operand.hbm [shape: f32[128,128], index: 1, kind: input, shape index: {}]
  %s2 = inlined_call_operand.vmem [shape: f32[1,128], index: 2, kind: input, shape index: {}]
  %s3 = inlined_call_operand.hbm [shape: f32[64,64], index: 3, kind: input, shape index: {}]
  %s4 = inlined_call_operand.vmem [shape: f32[1,64], index: 4, kind: input, shape index: {}]
  %s5 = inlined_call_operand.hbm [shape: f32[32,32], index: 5, kind: input, shape index: {}]
  %s6 = inlined_call_operand.vmem [shape: f32[1,32], index: 6, kind: input, shape index: {}]
  %s7 = inlined_call_operand.hbm [shape: f32[64,64], index: 7, kind: input, shape index: {}]
  %s8 = inlined_call_operand.vmem [shape: f32[1,64], index: 8, kind: input, shape index: {}]
  %s9 = inlined_call_operand.hbm [shape: f32[64,128], index: 9, kind: input, shape index: {}]
  %s10 = inlined_call_operand.vmem [shape: f32[1,128], index: 10, kind: input, shape index: {}]
  %s11 = inlined_call_operand.hbm [shape: f32[48,128], index: 11, kind: output, shape index: {}]
  %s12 = sld [smem:[#allocation0]]
  $region101: #{tpu_custom_call.1} parent=0
    _
  %s14 = ssub.s32 1, %s12
  %s15 = scalar_select 0, %s14, %s12
  $region1: #{tpu_custom_call.1} parent=0
    #allocation2 [shape = 'u8[24576]{0}', space=vmem, size = 0x6000, scoped, tag = 'input window, operand 0']
    #allocation3 [shape = 's32[2]{0}', space=sflag, size = 0x8, scoped, tag = 'scoped memory for tpu_custom_call.1']
    #allocation4 [shape = 's32[2]{0}', space=sflag, size = 0x8, scoped, tag = 'scoped memory for tpu_custom_call.1']
    #allocation5 [shape = 'u8[65536]{0}', space=vmem, size = 0x10000, scoped, tag = 'input window, operand 1, single buffered']
    #allocation6 [shape = 's32[1]{0}', space=sflag, size = 0x4, scoped, tag = 'scoped memory for tpu_custom_call.1']
    #allocation7 [shape = 'u8[32768]{0}', space=vmem, size = 0x8000, scoped, tag = 'input window, operand 3, single buffered']
    #allocation8 [shape = 'u8[16384]{0}', space=vmem, size = 0x4000, scoped, tag = 'input window, operand 5, single buffered']
    #allocation9 [shape = 's32[1]{0}', space=sflag, size = 0x4, scoped, tag = 'scoped memory for tpu_custom_call.1']
    #allocation10 [shape = 'u8[32768]{0}', space=vmem, size = 0x8000, scoped, tag = 'input window, operand 7, single buffered']
    #allocation11 [shape = 'u8[32768]{0}', space=vmem, size = 0x8000, scoped, tag = 'input window, operand 9, single buffered']
    #allocation12 [shape = 's32[1]{0}', space=sflag, size = 0x4, scoped, tag = 'scoped memory for tpu_custom_call.1']
    #allocation13 [shape = 'u8[24576]{0}', space=vmem, size = 0x6000, scoped, tag = 'output window, operand 0']
    %16 = vsyncpa [#allocation3], 0
    %s17 = scalar_lea.sflag [#allocation3], 1
    %18 = vsyncpa %s17, 0
    %19 = vsyncpa [#allocation6], 0
    %20 = vsyncpa [#allocation9], 0
    %21 = vsyncpa [#allocation12], 0
    %22 = vsyncpa [#allocation4], 0
    %s23 = scalar_lea.sflag [#allocation4], 1
    %24 = vsyncpa %s23, 0
    loop: start=0, step=1, limit=4
    $region2: #{tpu_custom_call.1} parent=1 // loop_pre_header
      _
    $region3: #{tpu_custom_call.1} parent=1 // loop_header
      %s26 = sphi 0, %s30
      %p27 = scmp.ge.s32.totalorder %s26, 4
      %s36 = sphi 0, %s38
      %s39 = sphi 0, %s36
      %s40 = sphi 0, %s39
      %s56 = sphi 0, %s40
      %s60 = sphi 0, %s60
      %s62 = sphi 0, %s60
      %s63 = sphi 0, %s62
      %s77 = sphi 0, %s63
      %s81 = sphi 0, %s81
      %s83 = sphi 0, %s81
      %s84 = sphi 0, %s83
      %s98 = sphi 0, %s84
      %s102 = sphi 0, %s102
      %s104 = sphi 0, %s102
      %s105 = sphi 0, %s104
      %s119 = sphi 0, %s105
      %s123 = sphi 0, %s123
      %s125 = sphi 0, %s123
      %s126 = sphi 0, %s125
      %s140 = sphi 0, %s126
      %s144 = sphi 0, %s144
      %s146 = sphi 0, %s144
      %s147 = sphi 0, %s146
      %s161 = sphi 0, %s147
      %s165 = sphi 0, %s165
      %s167 = sphi 0, %s165
      %s168 = sphi 0, %s167
      %s182 = sphi 0, %s168
      %s186 = sphi 0, %s186
      %s188 = sphi 0, %s186
      %s189 = sphi 0, %s188
      %s203 = sphi 0, %s189
      %s207 = sphi 0, %s207
      %s209 = sphi 0, %s207
      %s210 = sphi 0, %s209
      %s224 = sphi 0, %s210
      %s228 = sphi 0, %s228
      %s230 = sphi 0, %s228
      %s231 = sphi 0, %s230
      %s245 = sphi 0, %s231
      %s249 = sphi 0, %s249
      %s251 = sphi 0, %s249
      %s252 = sphi 0, %s251
      %s266 = sphi 0, %s252
      %s272 = sphi 0, %s274
      %s275 = sphi 0, %s272
      %s276 = sphi 0, %s275
      %s292 = sphi 0, %s276
    $region4: #{tpu_custom_call.1} parent=1 // loop_header_branch
      %29 = sbr.rel (%p27) target = $region8
    $region5: #{tpu_custom_call.1} parent=1 // loop_body
      %s31 = ssub.s32 %s26, 1
      %s32 = ssub.s32 %s26, 2
      %s33 = sadd.s32 %s26, 1
      %s34 = ssub.s32 %s26, %s33
      %p35 = scmp.eq.s32.totalorder %s34, 0
      %s37 = sadd.s32 %s36, 1
      %s38 = scalar_select %p35, %s36, %s37
      %p41 = pneg %p35
      %p42 = scmp.eq.s32.totalorder %s26, 1
      %p43 = por %p41, %p42
      %p44 = scmp.ne.s32.totalorder %s36, %s39
      %p45 = scmp.eq.s32.totalorder %s26, 0
      %p46 = por %p44, %p45
      %p47 = scmp.ne.s32.totalorder %s36, %s39
      %p48 = scmp.eq.s32.totalorder %s31, 1
      %p49 = por %p47, %p48
      %p50 = scmp.ne.s32.totalorder %s39, %s40
      %p51 = scmp.eq.s32.totalorder %s31, 0
      %p52 = por %p50, %p51
      %p53 = scmp.ne.s32.totalorder %s39, %s40
      %p54 = scmp.eq.s32.totalorder %s32, 1
      %p55 = por %p53, %p54
      %p57 = scmp.ne.s32.totalorder %s40, %s56
      %p58 = scmp.eq.s32.totalorder %s32, 0
      %p59 = por %p57, %p58
      %s61 = sadd.s32 %s60, 1
      %p64 = scmp.eq.s32.totalorder %s26, 1
      %p65 = scmp.ne.s32.totalorder %s60, %s62
      %p66 = scmp.eq.s32.totalorder %s26, 0
      %p67 = por %p65, %p66
      %p68 = scmp.ne.s32.totalorder %s60, %s62
      %p69 = scmp.eq.s32.totalorder %s31, 1
      %p70 = por %p68, %p69
      %p71 = scmp.ne.s32.totalorder %s62, %s63
      %p72 = scmp.eq.s32.totalorder %s31, 0
      %p73 = por %p71, %p72
      %p74 = scmp.ne.s32.totalorder %s62, %s63
      %p75 = scmp.eq.s32.totalorder %s32, 1
      %p76 = por %p74, %p75
      %p78 = scmp.ne.s32.totalorder %s63, %s77
      %p79 = scmp.eq.s32.totalorder %s32, 0
      %p80 = por %p78, %p79
      %s82 = sadd.s32 %s81, 1
      %p85 = scmp.eq.s32.totalorder %s26, 1
      %p86 = scmp.ne.s32.totalorder %s81, %s83
      %p87 = scmp.eq.s32.totalorder %s26, 0
      %p88 = por %p86, %p87
      %p89 = scmp.ne.s32.totalorder %s81, %s83
      %p90 = scmp.eq.s32.totalorder %s31, 1
      %p91 = por %p89, %p90
      %p92 = scmp.ne.s32.totalorder %s83, %s84
      %p93 = scmp.eq.s32.totalorder %s31, 0
      %p94 = por %p92, %p93
      %p95 = scmp.ne.s32.totalorder %s83, %s84
      %p96 = scmp.eq.s32.totalorder %s32, 1
      %p97 = por %p95, %p96
      %p99 = scmp.ne.s32.totalorder %s84, %s98
      %p100 = scmp.eq.s32.totalorder %s32, 0
      %p101 = por %p99, %p100
      %s103 = sadd.s32 %s102, 1
      %p106 = scmp.eq.s32.totalorder %s26, 1
      %p107 = scmp.ne.s32.totalorder %s102, %s104
      %p108 = scmp.eq.s32.totalorder %s26, 0
      %p109 = por %p107, %p108
      %p110 = scmp.ne.s32.totalorder %s102, %s104
      %p111 = scmp.eq.s32.totalorder %s31, 1
      %p112 = por %p110, %p111
      %p113 = scmp.ne.s32.totalorder %s104, %s105
      %p114 = scmp.eq.s32.totalorder %s31, 0
      %p115 = por %p113, %p114
      %p116 = scmp.ne.s32.totalorder %s104, %s105
      %p117 = scmp.eq.s32.totalorder %s32, 1
      %p118 = por %p116, %p117
      %p120 = scmp.ne.s32.totalorder %s105, %s119
      %p121 = scmp.eq.s32.totalorder %s32, 0
      %p122 = por %p120, %p121
      %s124 = sadd.s32 %s123, 1
      %p127 = scmp.eq.s32.totalorder %s26, 1
      %p128 = scmp.ne.s32.totalorder %s123, %s125
      %p129 = scmp.eq.s32.totalorder %s26, 0
      %p130 = por %p128, %p129
      %p131 = scmp.ne.s32.totalorder %s123, %s125
      %p132 = scmp.eq.s32.totalorder %s31, 1
      %p133 = por %p131, %p132
      %p134 = scmp.ne.s32.totalorder %s125, %s126
      %p135 = scmp.eq.s32.totalorder %s31, 0
      %p136 = por %p134, %p135
      %p137 = scmp.ne.s32.totalorder %s125, %s126
      %p138 = scmp.eq.s32.totalorder %s32, 1
      %p139 = por %p137, %p138
      %p141 = scmp.ne.s32.totalorder %s126, %s140
      %p142 = scmp.eq.s32.totalorder %s32, 0
      %p143 = por %p141, %p142
      %s145 = sadd.s32 %s144, 1
      %p148 = scmp.eq.s32.totalorder %s26, 1
      %p149 = scmp.ne.s32.totalorder %s144, %s146
      %p150 = scmp.eq.s32.totalorder %s26, 0
      %p151 = por %p149, %p150
      %p152 = scmp.ne.s32.totalorder %s144, %s146
      %p153 = scmp.eq.s32.totalorder %s31, 1
      %p154 = por %p152, %p153
      %p155 = scmp.ne.s32.totalorder %s146, %s147
      %p156 = scmp.eq.s32.totalorder %s31, 0
      %p157 = por %p155, %p156
      %p158 = scmp.ne.s32.totalorder %s146, %s147
      %p159 = scmp.eq.s32.totalorder %s32, 1
      %p160 = por %p158, %p159
      %p162 = scmp.ne.s32.totalorder %s147, %s161
      %p163 = scmp.eq.s32.totalorder %s32, 0
      %p164 = por %p162, %p163
      %s166 = sadd.s32 %s165, 1
      %p169 = scmp.eq.s32.totalorder %s26, 1
      %p170 = scmp.ne.s32.totalorder %s165, %s167
      %p171 = scmp.eq.s32.totalorder %s26, 0
      %p172 = por %p170, %p171
      %p173 = scmp.ne.s32.totalorder %s165, %s167
      %p174 = scmp.eq.s32.totalorder %s31, 1
      %p175 = por %p173, %p174
      %p176 = scmp.ne.s32.totalorder %s167, %s168
      %p177 = scmp.eq.s32.totalorder %s31, 0
      %p178 = por %p176, %p177
      %p179 = scmp.ne.s32.totalorder %s167, %s168
      %p180 = scmp.eq.s32.totalorder %s32, 1
      %p181 = por %p179, %p180
      %p183 = scmp.ne.s32.totalorder %s168, %s182
      %p184 = scmp.eq.s32.totalorder %s32, 0
      %p185 = por %p183, %p184
      %s187 = sadd.s32 %s186, 1
      %p190 = scmp.eq.s32.totalorder %s26, 1
      %p191 = scmp.ne.s32.totalorder %s186, %s188
      %p192 = scmp.eq.s32.totalorder %s26, 0
      %p193 = por %p191, %p192
      %p194 = scmp.ne.s32.totalorder %s186, %s188
      %p195 = scmp.eq.s32.totalorder %s31, 1
      %p196 = por %p194, %p195
      %p197 = scmp.ne.s32.totalorder %s188, %s189
      %p198 = scmp.eq.s32.totalorder %s31, 0
      %p199 = por %p197, %p198
      %p200 = scmp.ne.s32.totalorder %s188, %s189
      %p201 = scmp.eq.s32.totalorder %s32, 1
      %p202 = por %p200, %p201
      %p204 = scmp.ne.s32.totalorder %s189, %s203
      %p205 = scmp.eq.s32.totalorder %s32, 0
      %p206 = por %p204, %p205
      %s208 = sadd.s32 %s207, 1
      %p211 = scmp.eq.s32.totalorder %s26, 1
      %p212 = scmp.ne.s32.totalorder %s207, %s209
      %p213 = scmp.eq.s32.totalorder %s26, 0
      %p214 = por %p212, %p213
      %p215 = scmp.ne.s32.totalorder %s207, %s209
      %p216 = scmp.eq.s32.totalorder %s31, 1
      %p217 = por %p215, %p216
      %p218 = scmp.ne.s32.totalorder %s209, %s210
      %p219 = scmp.eq.s32.totalorder %s31, 0
      %p220 = por %p218, %p219
      %p221 = scmp.ne.s32.totalorder %s209, %s210
      %p222 = scmp.eq.s32.totalorder %s32, 1
      %p223 = por %p221, %p222
      %p225 = scmp.ne.s32.totalorder %s210, %s224
      %p226 = scmp.eq.s32.totalorder %s32, 0
      %p227 = por %p225, %p226
      %s229 = sadd.s32 %s228, 1
      %p232 = scmp.eq.s32.totalorder %s26, 1
      %p233 = scmp.ne.s32.totalorder %s228, %s230
      %p234 = scmp.eq.s32.totalorder %s26, 0
      %p235 = por %p233, %p234
      %p236 = scmp.ne.s32.totalorder %s228, %s230
      %p237 = scmp.eq.s32.totalorder %s31, 1
      %p238 = por %p236, %p237
      %p239 = scmp.ne.s32.totalorder %s230, %s231
      %p240 = scmp.eq.s32.totalorder %s31, 0
      %p241 = por %p239, %p240
      %p242 = scmp.ne.s32.totalorder %s230, %s231
      %p243 = scmp.eq.s32.totalorder %s32, 1
      %p244 = por %p242, %p243
      %p246 = scmp.ne.s32.totalorder %s231, %s245
      %p247 = scmp.eq.s32.totalorder %s32, 0
      %p248 = por %p246, %p247
      %s250 = sadd.s32 %s249, 1
      %p253 = scmp.eq.s32.totalorder %s26, 1
      %p254 = scmp.ne.s32.totalorder %s249, %s251
      %p255 = scmp.eq.s32.totalorder %s26, 0
      %p256 = por %p254, %p255
      %p257 = scmp.ne.s32.totalorder %s249, %s251
      %p258 = scmp.eq.s32.totalorder %s31, 1
      %p259 = por %p257, %p258
      %p260 = scmp.ne.s32.totalorder %s251, %s252
      %p261 = scmp.eq.s32.totalorder %s31, 0
      %p262 = por %p260, %p261
      %p263 = scmp.ne.s32.totalorder %s251, %s252
      %p264 = scmp.eq.s32.totalorder %s32, 1
      %p265 = por %p263, %p264
      %p267 = scmp.ne.s32.totalorder %s252, %s266
      %p268 = scmp.eq.s32.totalorder %s32, 0
      %p269 = por %p267, %p268
      %s270 = ssub.s32 %s26, %s33
      %p271 = scmp.eq.s32.totalorder %s270, 0
      %s273 = sadd.s32 %s272, 1
      %s274 = scalar_select %p271, %s272, %s273
      %p277 = pneg %p271
      %p278 = scmp.eq.s32.totalorder %s26, 1
      %p279 = por %p277, %p278
      %p280 = scmp.ne.s32.totalorder %s272, %s275
      %p281 = scmp.eq.s32.totalorder %s26, 0
      %p282 = por %p280, %p281
      %p283 = scmp.ne.s32.totalorder %s272, %s275
      %p284 = scmp.eq.s32.totalorder %s31, 1
      %p285 = por %p283, %p284
      %p286 = scmp.ne.s32.totalorder %s275, %s276
      %p287 = scmp.eq.s32.totalorder %s31, 0
      %p288 = por %p286, %p287
      %p289 = scmp.ne.s32.totalorder %s275, %s276
      %p290 = scmp.eq.s32.totalorder %s32, 1
      %p291 = por %p289, %p290
      %p293 = scmp.ne.s32.totalorder %s276, %s292
      %p294 = scmp.eq.s32.totalorder %s32, 0
      %p295 = por %p293, %p294
      %p296 = scmp.le.s32.totalorder 1, %s26
      %p297 = scmp.lt.s32.totalorder %s26, 3
      %p298 = pnand %p296, %p297
      %p299 = pneg %p298
      // Predicated region
      $region9: #{tpu_custom_call.1} parent=5 // pred_check
        _
      $region10: #{tpu_custom_call.1} parent=5 // pred_check_branch
        %301 = sbr.rel (%p298) target = $region12
      $region11: #{tpu_custom_call.1} parent=5 // pred_region
        %s302 = ssub.s32 %s26, 1
        // Predicated region
        $region13: #{tpu_custom_call.1} parent=11 // pred_check
          %p303 = pneg %p73
        $region14: #{tpu_custom_call.1} parent=11 // pred_check_branch
          %305 = sbr.rel (%p303) target = $region16
        $region15: #{tpu_custom_call.1} parent=11 // pred_region
          %307 = vsyncadd [#allocation6], 0
          %s308 = sshll.u32 %s1, 4
          %s309 = int_to_ptr.hbm [resolvable:$true] %s308
          %s310 = sshll.u32 [#allocation5], 4
          %s311 = int_to_ptr.vmem [resolvable:$true] %s310
          %316 = dma.hbm_to_vmem [thread:$0]  %s309, 2048, %s311, [#allocation6], 128, 128, 8
        $region16: #{tpu_custom_call.1} parent=11 // pred_fallthru
          _
        // Predicated region
        $region17: #{tpu_custom_call.1} parent=11 // pred_check
          %p317 = pneg %p94
        $region18: #{tpu_custom_call.1} parent=11 // pred_check_branch
          %319 = sbr.rel (%p317) target = $region20
        $region19: #{tpu_custom_call.1} parent=11 // pred_region
          _
        $region20: #{tpu_custom_call.1} parent=11 // pred_fallthru
          _
        // Predicated region
        $region21: #{tpu_custom_call.1} parent=11 // pred_check
          %p320 = pneg %p115
        $region22: #{tpu_custom_call.1} parent=11 // pred_check_branch
          %322 = sbr.rel (%p320) target = $region24
        $region23: #{tpu_custom_call.1} parent=11 // pred_region
          %324 = vsyncadd [#allocation6], 0
          %s325 = sshll.u32 %s3, 4
          %s326 = int_to_ptr.hbm [resolvable:$true] %s325
          %s327 = sshll.u32 [#allocation7], 4
          %s328 = int_to_ptr.vmem [resolvable:$true] %s327
          %333 = dma.hbm_to_vmem [thread:$0]  %s326, 1024, %s328, [#allocation6], 128, 128, 8
        $region24: #{tpu_custom_call.1} parent=11 // pred_fallthru
          _
        // Predicated region
        $region25: #{tpu_custom_call.1} parent=11 // pred_check
          %p334 = pneg %p136
        $region26: #{tpu_custom_call.1} parent=11 // pred_check_branch
          %336 = sbr.rel (%p334) target = $region28
        $region27: #{tpu_custom_call.1} parent=11 // pred_region
          _
        $region28: #{tpu_custom_call.1} parent=11 // pred_fallthru
          _
        // Predicated region
        $region29: #{tpu_custom_call.1} parent=11 // pred_check
          %p337 = pneg %p157
        $region30: #{tpu_custom_call.1} parent=11 // pred_check_branch
          %339 = sbr.rel (%p337) target = $region32
        $region31: #{tpu_custom_call.1} parent=11 // pred_region
          %341 = vsyncadd [#allocation9], 0
          %s342 = sshll.u32 %s5, 4
          %s343 = int_to_ptr.hbm [resolvable:$true] %s342
          %s344 = sshll.u32 [#allocation8], 4
          %s345 = int_to_ptr.vmem [resolvable:$true] %s344
          %350 = dma.hbm_to_vmem [thread:$0]  %s343, 512, %s345, [#allocation9], 128, 128, 8
        $region32: #{tpu_custom_call.1} parent=11 // pred_fallthru
          _
        // Predicated region
        $region33: #{tpu_custom_call.1} parent=11 // pred_check
          %p351 = pneg %p178
        $region34: #{tpu_custom_call.1} parent=11 // pred_check_branch
          %353 = sbr.rel (%p351) target = $region36
        $region35: #{tpu_custom_call.1} parent=11 // pred_region
          _
        $region36: #{tpu_custom_call.1} parent=11 // pred_fallthru
          _
        // Predicated region
        $region37: #{tpu_custom_call.1} parent=11 // pred_check
          %p354 = pneg %p199
        $region38: #{tpu_custom_call.1} parent=11 // pred_check_branch
          %356 = sbr.rel (%p354) target = $region40
        $region39: #{tpu_custom_call.1} parent=11 // pred_region
          %358 = vsyncadd [#allocation9], 0
          %s359 = sshll.u32 %s7, 4
          %s360 = int_to_ptr.hbm [resolvable:$true] %s359
          %s361 = sshll.u32 [#allocation10], 4
          %s362 = int_to_ptr.vmem [resolvable:$true] %s361
          %367 = dma.hbm_to_vmem [thread:$0]  %s360, 1024, %s362, [#allocation9], 128, 128, 8
        $region40: #{tpu_custom_call.1} parent=11 // pred_fallthru
          _
        // Predicated region
        $region41: #{tpu_custom_call.1} parent=11 // pred_check
          %p368 = pneg %p220
        $region42: #{tpu_custom_call.1} parent=11 // pred_check_branch
          %370 = sbr.rel (%p368) target = $region44
        $region43: #{tpu_custom_call.1} parent=11 // pred_region
          _
        $region44: #{tpu_custom_call.1} parent=11 // pred_fallthru
          _
        // Predicated region
        $region45: #{tpu_custom_call.1} parent=11 // pred_check
          %p371 = pneg %p241
        $region46: #{tpu_custom_call.1} parent=11 // pred_check_branch
          %373 = sbr.rel (%p371) target = $region48
        $region47: #{tpu_custom_call.1} parent=11 // pred_region
          %375 = vsyncadd [#allocation12], 0
          %s376 = sshll.u32 %s9, 4
          %s377 = int_to_ptr.hbm [resolvable:$true] %s376
          %s378 = sshll.u32 [#allocation11], 4
          %s379 = int_to_ptr.vmem [resolvable:$true] %s378
          %384 = dma.hbm_to_vmem [thread:$0]  %s377, 1024, %s379, [#allocation12], 128, 128, 8
        $region48: #{tpu_custom_call.1} parent=11 // pred_fallthru
          _
        // Predicated region
        $region49: #{tpu_custom_call.1} parent=11 // pred_check
          %p385 = pneg %p262
        $region50: #{tpu_custom_call.1} parent=11 // pred_check_branch
          %387 = sbr.rel (%p385) target = $region52
        $region51: #{tpu_custom_call.1} parent=11 // pred_region
          _
        $region52: #{tpu_custom_call.1} parent=11 // pred_fallthru
          _
      $region12: #{tpu_custom_call.1} parent=5 // pred_fallthru
        _
      %p388 = scmp.lt.s32.totalorder %s26, 2
      // Predicated region
      $region53: #{tpu_custom_call.1} parent=5 // pred_check
        %p389 = pneg %p388
      $region54: #{tpu_custom_call.1} parent=5 // pred_check_branch
        %391 = sbr.rel (%p389) target = $region56
      $region55: #{tpu_custom_call.1} parent=5 // pred_region
        // Predicated region
        $region57: #{tpu_custom_call.1} parent=55 // pred_check
          %p392 = pneg %p46
        $region58: #{tpu_custom_call.1} parent=55 // pred_check_branch
          %394 = sbr.rel (%p392) target = $region60
        $region59: #{tpu_custom_call.1} parent=55 // pred_region
          %s395 = sand.u32 %s36, 1
          %s396 = scalar_lea.sflag [#allocation3], %s395
          %s397 = sand.u32 %s36, 1
          %s398 = smul.addr %s397, 24
          %s399 = scalar_lea.vmem [#allocation2], %s398
          %s400 = smul.u32 3, %s26
          %402 = vsyncadd %s396, 0
          %s403 = smul.addr %s400, 8
          %s404 = scalar_lea.hbm %s0, %s403
          %s405 = sshll.u32 %s404, 4
          %s406 = int_to_ptr.hbm [resolvable:$true] %s405
          %s407 = sshll.u32 %s399, 4
          %s408 = int_to_ptr.vmem [resolvable:$true] %s407
          %413 = dma.hbm_to_vmem [thread:$0]  %s406, 384, %s408, %s396, 128, 128, 8
        $region60: #{tpu_custom_call.1} parent=55 // pred_fallthru
          _
      $region56: #{tpu_custom_call.1} parent=5 // pred_fallthru
        _
      %p414 = scmp.le.s32.totalorder 1, %s26
      %p415 = scmp.lt.s32.totalorder %s26, 3
      %p416 = pnand %p414, %p415
      %p417 = pneg %p416
      // Predicated region
      $region61: #{tpu_custom_call.1} parent=5 // pred_check
        _
      $region62: #{tpu_custom_call.1} parent=5 // pred_check_branch
        %419 = sbr.rel (%p416) target = $region64
      $region63: #{tpu_custom_call.1} parent=5 // pred_region
        %s420 = ssub.s32 %s26, 1
        %s421 = sand.u32 %s39, 1
        %s422 = scalar_lea.sflag [#allocation3], %s421
        %s423 = sand.u32 %s39, 1
        %s424 = smul.addr %s423, 24
        %s425 = scalar_lea.vmem [#allocation2], %s424
        // Predicated region
        $region65: #{tpu_custom_call.1} parent=63 // pred_check
          %p426 = pneg %p52
        $region66: #{tpu_custom_call.1} parent=63 // pred_check_branch
          %428 = sbr.rel (%p426) target = $region68
        $region67: #{tpu_custom_call.1} parent=63 // pred_region
          %430 = dma.done %s422, 384
        $region68: #{tpu_custom_call.1} parent=63 // pred_fallthru
          _
        // Predicated region
        $region69: #{tpu_custom_call.1} parent=63 // pred_check
          %p431 = pneg %p73
        $region70: #{tpu_custom_call.1} parent=63 // pred_check_branch
          %433 = sbr.rel (%p431) target = $region72
        $region71: #{tpu_custom_call.1} parent=63 // pred_region
          %435 = dma.done [#allocation6], 2048
        $region72: #{tpu_custom_call.1} parent=63 // pred_fallthru
          _
        // Predicated region
        $region73: #{tpu_custom_call.1} parent=63 // pred_check
          %p436 = pneg %p115
        $region74: #{tpu_custom_call.1} parent=63 // pred_check_branch
          %438 = sbr.rel (%p436) target = $region76
        $region75: #{tpu_custom_call.1} parent=63 // pred_region
          %440 = dma.done [#allocation6], 1024
        $region76: #{tpu_custom_call.1} parent=63 // pred_fallthru
          _
        // Predicated region
        $region77: #{tpu_custom_call.1} parent=63 // pred_check
          %p441 = pneg %p157
        $region78: #{tpu_custom_call.1} parent=63 // pred_check_branch
          %443 = sbr.rel (%p441) target = $region80
        $region79: #{tpu_custom_call.1} parent=63 // pred_region
          %445 = dma.done [#allocation9], 512
        $region80: #{tpu_custom_call.1} parent=63 // pred_fallthru
          _
        // Predicated region
        $region81: #{tpu_custom_call.1} parent=63 // pred_check
          %p446 = pneg %p199
        $region82: #{tpu_custom_call.1} parent=63 // pred_check_branch
          %448 = sbr.rel (%p446) target = $region84
        $region83: #{tpu_custom_call.1} parent=63 // pred_region
          %450 = dma.done [#allocation9], 1024
        $region84: #{tpu_custom_call.1} parent=63 // pred_fallthru
          _
        // Predicated region
        $region85: #{tpu_custom_call.1} parent=63 // pred_check
          %p451 = pneg %p241
        $region86: #{tpu_custom_call.1} parent=63 // pred_check_branch
          %453 = sbr.rel (%p451) target = $region88
        $region87: #{tpu_custom_call.1} parent=63 // pred_region
          %455 = dma.done [#allocation12], 1024
        $region88: #{tpu_custom_call.1} parent=63 // pred_fallthru
          _
        %s456 = sand.u32 %s39, 1
        %s457 = scalar_lea.sflag [#allocation3], %s456
        %s458 = sand.u32 %s39, 1
        %s459 = smul.addr %s458, 24
        %s460 = scalar_lea.vmem [#allocation2], %s459
        %p461 = pneg %p52
        %p462 = pneg %p49
        %p463 = pneg %p73
        %p464 = pneg %p70
        %p465 = pneg %p94
        %p466 = pneg %p91
        %p467 = pneg %p115
        %p468 = pneg %p112
        %p469 = pneg %p136
        %p470 = pneg %p133
        %p471 = pneg %p157
        %p472 = pneg %p154
        %p473 = pneg %p178
        %p474 = pneg %p175
        %p475 = pneg %p199
        %p476 = pneg %p196
        %p477 = pneg %p220
        %p478 = pneg %p217
        %p479 = pneg %p241
        %p480 = pneg %p238
        %p481 = pneg %p262
        %p482 = pneg %p259
        %p483 = pneg %p288
        %p484 = pneg %p285
        %s485 = sand.u32 %s275, 1
        %s486 = scalar_lea.sflag [#allocation4], %s485
        %s487 = sand.u32 %s275, 1
        %s488 = smul.addr %s487, 24
        %s489 = scalar_lea.vmem [#allocation13], %s488
        %s490 = smul.u32 3, %s31
        %s491 = smul.u32 3, %s31
        %v492 = vld [vmem:[%s425] sm:$0xff]
        %v493 = vld [vmem:[%s425 + $0x8] sm:$0xff]
        %v494 = vld [vmem:[%s425 + $0x10] sm:$0xff]
        %v495 = vld [vmem:[#allocation5] sm:$0xff]
        %v496 = vld [vmem:[#allocation5 + $0x8] sm:$0xff]
        %v497 = vld [vmem:[#allocation5 + $0x10] sm:$0xff]
        %v498 = vld [vmem:[#allocation5 + $0x18] sm:$0xff]
        %v499 = vld [vmem:[#allocation5 + $0x20] sm:$0xff]
        %v500 = vld [vmem:[#allocation5 + $0x28] sm:$0xff]
        %v501 = vld [vmem:[#allocation5 + $0x30] sm:$0xff]
        %v502 = vld [vmem:[#allocation5 + $0x38] sm:$0xff]
        %v503 = vld [vmem:[#allocation5 + $0x40] sm:$0xff]
        %v504 = vld [vmem:[#allocation5 + $0x48] sm:$0xff]
        %v505 = vld [vmem:[#allocation5 + $0x50] sm:$0xff]
        %v506 = vld [vmem:[#allocation5 + $0x58] sm:$0xff]
        %v507 = vld [vmem:[#allocation5 + $0x60] sm:$0xff]
        %v508 = vld [vmem:[#allocation5 + $0x68] sm:$0xff]
        %v509 = vld [vmem:[#allocation5 + $0x70] sm:$0xff]
        %v510 = vld [vmem:[#allocation5 + $0x78] sm:$0xff]
        %v511 = vld [vmem:[%s2] sm:$0x1]
        %v513 = vperm.slane %v511, 0
        %515 = vmatpush.msra.mxu0 %v510
        %516 = vmatpush.msra.mxu0 %v509
        %517 = vmatpush.msra.mxu0 %v508
        %518 = vmatpush.msra.mxu0 %v507
        %519 = vmatpush.msra.mxu0 %v506
        %520 = vmatpush.msra.mxu0 %v505
        %521 = vmatpush.msra.mxu0 %v504
        %522 = vmatpush.msra.mxu0 %v503
        %523 = vmatpush.msra.mxu0 %v502
        %524 = vmatpush.msra.mxu0 %v501
        %525 = vmatpush.msra.mxu0 %v500
        %526 = vmatpush.msra.mxu0 %v499
        %527 = vmatpush.msra.mxu0 %v498
        %528 = vmatpush.msra.mxu0 %v497
        %529 = vmatpush.msra.mxu0 %v496
        %530 = vmatpush.msra.mxu0 %v495
        %531 = vmatmul.f32.gmra.mxu0 %v492
        %v532 = vpop.f32.mrf.mxu0
        %v533 = vadd.f32 %v513, %v532
        %534 = vmatmul.f32.gmra.mxu0 %v493
        %v535 = vpop.f32.mrf.mxu0
        %v536 = vadd.f32 %v513, %v535
        %537 = vmatmul.f32.gmra.mxu0 %v494
        %v538 = vpop.f32.mrf.mxu0
        %v539 = vadd.f32 %v513, %v538
        %540 = vdwg.mxu0
        %v541 = vmax.f32 %v533, 0.0
        %v542 = vmax.f32 %v536, 0.0
        %v543 = vmax.f32 %v539, 0.0
        %547 = vrot.lane.b32.xlu0 %v541, 64
        %v548 = vpop.permute.xlu0 %547
        %549 = vrot.lane.b32.xlu0 %v542, 64
        %v550 = vpop.permute.xlu0 %549
        %551 = vrot.lane.b32.xlu0 %v543, 64
        %v552 = vpop.permute.xlu0 %551
        %v556 = vmax.f32 %v541, %v548
        %v557 = vmax.f32 %v542, %v550
        %v558 = vmax.f32 %v543, %v552
        %v559 = vld [vmem:[#allocation7] sm:$0xff]
        %v560 = vld [vmem:[#allocation7 + $0x8] sm:$0xff]
        %v561 = vld [vmem:[#allocation7 + $0x10] sm:$0xff]
        %v562 = vld [vmem:[#allocation7 + $0x18] sm:$0xff]
        %v563 = vld [vmem:[#allocation7 + $0x20] sm:$0xff]
        %v564 = vld [vmem:[#allocation7 + $0x28] sm:$0xff]
        %v565 = vld [vmem:[#allocation7 + $0x30] sm:$0xff]
        %v566 = vld [vmem:[#allocation7 + $0x38] sm:$0xff]
        %v567 = vld [vmem:[%s4] sm:$0x1]
        %v569 = vperm.slane %v567, 0
        %vm571 = vcmask 523264
        %v573 = vsel %vm571, %v556, 0
        %v576 = vsel %vm571, %v557, 0
        %v579 = vsel %vm571, %v558, 0
        %581 = vmatpush.msra.mxu0 0.0
        %582 = vmatpush.msra.mxu0 0.0
        %583 = vmatpush.msra.mxu0 0.0
        %584 = vmatpush.msra.mxu0 0.0
        %585 = vmatpush.msra.mxu0 0.0
        %586 = vmatpush.msra.mxu0 0.0
        %587 = vmatpush.msra.mxu0 0.0
        %588 = vmatpush.msra.mxu0 0.0
        %589 = vmatpush.msra.mxu0 %v566
        %590 = vmatpush.msra.mxu0 %v565
        %591 = vmatpush.msra.mxu0 %v564
        %592 = vmatpush.msra.mxu0 %v563
        %593 = vmatpush.msra.mxu0 %v562
        %594 = vmatpush.msra.mxu0 %v561
        %595 = vmatpush.msra.mxu0 %v560
        %596 = vmatpush.msra.mxu0 %v559
        %597 = vmatmul.f32.gmra.mxu0 %v573
        %v598 = vpop.f32.mrf.mxu0
        %v599 = vadd.f32 %v569, %v598
        %600 = vmatmul.f32.gmra.mxu0 %v576
        %v601 = vpop.f32.mrf.mxu0
        %v602 = vadd.f32 %v569, %v601
        %603 = vmatmul.f32.gmra.mxu0 %v579
        %v604 = vpop.f32.mrf.mxu0
        %v605 = vadd.f32 %v569, %v604
        %606 = vdwg.mxu0
        %v607 = vmax.f32 %v599, 0.0
        %v608 = vmax.f32 %v602, 0.0
        %v609 = vmax.f32 %v605, 0.0
        %613 = vrot.lane.b32.xlu0 %v607, 96
        %v614 = vpop.permute.xlu0 %613
        %615 = vrot.lane.b32.xlu0 %v608, 96
        %v616 = vpop.permute.xlu0 %615
        %617 = vrot.lane.b32.xlu0 %v609, 96
        %v618 = vpop.permute.xlu0 %617
        %v622 = vmax.f32 %v607, %v614
        %v623 = vmax.f32 %v608, %v616
        %v624 = vmax.f32 %v609, %v618
        %v625 = vld [vmem:[#allocation8] sm:$0xff]
        %v626 = vld [vmem:[#allocation8 + $0x8] sm:$0xff]
        %v627 = vld [vmem:[#allocation8 + $0x10] sm:$0xff]
        %v628 = vld [vmem:[#allocation8 + $0x18] sm:$0xff]
        %v629 = vld [vmem:[%s6] sm:$0x1]
        %v631 = vperm.slane %v629, 0
        %vm633 = vcmask 261120
        %v635 = vsel %vm633, %v622, 0
        %v638 = vsel %vm633, %v623, 0
        %v641 = vsel %vm633, %v624, 0
        %643 = vmatpush.msra.mxu0 0.0
        %644 = vmatpush.msra.mxu0 0.0
        %645 = vmatpush.msra.mxu0 0.0
        %646 = vmatpush.msra.mxu0 0.0
        %647 = vmatpush.msra.mxu0 0.0
        %648 = vmatpush.msra.mxu0 0.0
        %649 = vmatpush.msra.mxu0 0.0
        %650 = vmatpush.msra.mxu0 0.0
        %651 = vmatpush.msra.mxu0 0.0
        %652 = vmatpush.msra.mxu0 0.0
        %653 = vmatpush.msra.mxu0 0.0
        %654 = vmatpush.msra.mxu0 0.0
        %655 = vmatpush.msra.mxu0 %v628
        %656 = vmatpush.msra.mxu0 %v627
        %657 = vmatpush.msra.mxu0 %v626
        %658 = vmatpush.msra.mxu0 %v625
        %659 = vmatmul.f32.gmra.mxu0 %v635
        %v660 = vpop.f32.mrf.mxu0
        %v661 = vadd.f32 %v631, %v660
        %662 = vmatmul.f32.gmra.mxu0 %v638
        %v663 = vpop.f32.mrf.mxu0
        %v664 = vadd.f32 %v631, %v663
        %665 = vmatmul.f32.gmra.mxu0 %v641
        %v666 = vpop.f32.mrf.mxu0
        %v667 = vadd.f32 %v631, %v666
        %668 = vdwg.mxu0
        %v669 = vmax.f32 %v661, 0.0
        %v670 = vmax.f32 %v664, 0.0
        %v671 = vmax.f32 %v667, 0.0
        %675 = vrot.lane.b32.xlu0 %v669, 32
        %v676 = vpop.permute.xlu0 %675
        %677 = vrot.lane.b32.xlu0 %v670, 32
        %v678 = vpop.permute.xlu0 %677
        %679 = vrot.lane.b32.xlu0 %v671, 32
        %v680 = vpop.permute.xlu0 %679
        %v684 = vsel %vm633, %v669, %v676
        %v685 = vsel %vm633, %v670, %v678
        %v686 = vsel %vm633, %v671, %v680
        %v687 = vadd.f32 %v607, %v684
        %v688 = vadd.f32 %v608, %v685
        %v689 = vadd.f32 %v609, %v686
        %v690 = vld [vmem:[#allocation10] sm:$0xff]
        %v691 = vld [vmem:[#allocation10 + $0x8] sm:$0xff]
        %v692 = vld [vmem:[#allocation10 + $0x10] sm:$0xff]
        %v693 = vld [vmem:[#allocation10 + $0x18] sm:$0xff]
        %v694 = vld [vmem:[#allocation10 + $0x20] sm:$0xff]
        %v695 = vld [vmem:[#allocation10 + $0x28] sm:$0xff]
        %v696 = vld [vmem:[#allocation10 + $0x30] sm:$0xff]
        %v697 = vld [vmem:[#allocation10 + $0x38] sm:$0xff]
        %v698 = vld [vmem:[%s8] sm:$0x1]
        %v700 = vperm.slane %v698, 0
        %v703 = vsel %vm571, %v687, 0
        %v706 = vsel %vm571, %v688, 0
        %v709 = vsel %vm571, %v689, 0
        %711 = vmatpush.msra.mxu0 0.0
        %712 = vmatpush.msra.mxu0 0.0
        %713 = vmatpush.msra.mxu0 0.0
        %714 = vmatpush.msra.mxu0 0.0
        %715 = vmatpush.msra.mxu0 0.0
        %716 = vmatpush.msra.mxu0 0.0
        %717 = vmatpush.msra.mxu0 0.0
        %718 = vmatpush.msra.mxu0 0.0
        %719 = vmatpush.msra.mxu0 %v697
        %720 = vmatpush.msra.mxu0 %v696
        %721 = vmatpush.msra.mxu0 %v695
        %722 = vmatpush.msra.mxu0 %v694
        %723 = vmatpush.msra.mxu0 %v693
        %724 = vmatpush.msra.mxu0 %v692
        %725 = vmatpush.msra.mxu0 %v691
        %726 = vmatpush.msra.mxu0 %v690
        %727 = vmatmul.f32.gmra.mxu0 %v703
        %v728 = vpop.f32.mrf.mxu0
        %v729 = vadd.f32 %v700, %v728
        %730 = vmatmul.f32.gmra.mxu0 %v706
        %v731 = vpop.f32.mrf.mxu0
        %v732 = vadd.f32 %v700, %v731
        %733 = vmatmul.f32.gmra.mxu0 %v709
        %v734 = vpop.f32.mrf.mxu0
        %v735 = vadd.f32 %v700, %v734
        %736 = vdwg.mxu0
        %v737 = vmax.f32 %v729, 0.0
        %v738 = vmax.f32 %v732, 0.0
        %v739 = vmax.f32 %v735, 0.0
        %v740 = vld [vmem:[#allocation11] sm:$0xff]
        %v741 = vld [vmem:[#allocation11 + $0x8] sm:$0xff]
        %v742 = vld [vmem:[#allocation11 + $0x10] sm:$0xff]
        %v743 = vld [vmem:[#allocation11 + $0x18] sm:$0xff]
        %v744 = vld [vmem:[#allocation11 + $0x20] sm:$0xff]
        %v745 = vld [vmem:[#allocation11 + $0x28] sm:$0xff]
        %v746 = vld [vmem:[#allocation11 + $0x30] sm:$0xff]
        %v747 = vld [vmem:[#allocation11 + $0x38] sm:$0xff]
        %v748 = vld [vmem:[%s10] sm:$0x1]
        %v750 = vperm.slane %v748, 0
        %v753 = vsel %vm571, %v737, 0
        %v756 = vsel %vm571, %v738, 0
        %v759 = vsel %vm571, %v739, 0
        %761 = vmatpush.msra.mxu0 0.0
        %762 = vmatpush.msra.mxu0 0.0
        %763 = vmatpush.msra.mxu0 0.0
        %764 = vmatpush.msra.mxu0 0.0
        %765 = vmatpush.msra.mxu0 0.0
        %766 = vmatpush.msra.mxu0 0.0
        %767 = vmatpush.msra.mxu0 0.0
        %768 = vmatpush.msra.mxu0 0.0
        %769 = vmatpush.msra.mxu0 %v747
        %770 = vmatpush.msra.mxu0 %v746
        %771 = vmatpush.msra.mxu0 %v745
        %772 = vmatpush.msra.mxu0 %v744
        %773 = vmatpush.msra.mxu0 %v743
        %774 = vmatpush.msra.mxu0 %v742
        %775 = vmatpush.msra.mxu0 %v741
        %776 = vmatpush.msra.mxu0 %v740
        %777 = vmatmul.f32.gmra.mxu0 %v753
        %v778 = vpop.f32.mrf.mxu0
        %v779 = vadd.f32 %v750, %v778
        %780 = vmatmul.f32.gmra.mxu0 %v756
        %v781 = vpop.f32.mrf.mxu0
        %v782 = vadd.f32 %v750, %v781
        %783 = vmatmul.f32.gmra.mxu0 %v759
        %v784 = vpop.f32.mrf.mxu0
        %v785 = vadd.f32 %v750, %v784
        %786 = vdwg.mxu0
        %v787 = vtanh.pop %v779
        %v788 = vtanh.pop %v782
        %v789 = vtanh.pop %v785
        %790 = vst [vmem:[%s489] sm:$0xff] %v787
        %791 = vst [vmem:[%s489 + $0x8] sm:$0xff] %v788
        %792 = vst [vmem:[%s489 + $0x10] sm:$0xff] %v789
        %s793 = sand.u32 %s275, 1
        %s794 = scalar_lea.sflag [#allocation4], %s793
        %s795 = sand.u32 %s275, 1
        %s796 = smul.addr %s795, 24
        %s797 = scalar_lea.vmem [#allocation13], %s796
        // Predicated region
        $region89: #{tpu_custom_call.1} parent=63 // pred_check
          %p798 = pneg %p285
        $region90: #{tpu_custom_call.1} parent=63 // pred_check_branch
          %800 = sbr.rel (%p798) target = $region92
        $region91: #{tpu_custom_call.1} parent=63 // pred_region
          %s801 = smul.u32 3, %s31
          %803 = vsyncadd %s794, 0
          %s804 = smul.addr %s801, 8
          %s805 = scalar_lea.hbm %s11, %s804
          %s806 = sshll.u32 %s797, 4
          %s807 = int_to_ptr.vmem [resolvable:$true] %s806
          %s808 = sshll.u32 %s805, 4
          %s809 = int_to_ptr.hbm [resolvable:$true] %s808
          %814 = dma.vmem_to_hbm [thread:$0]  %s807, 384, %s809, %s794, 128, 128, 8
        $region92: #{tpu_custom_call.1} parent=63 // pred_fallthru
          _
      $region64: #{tpu_custom_call.1} parent=5 // pred_fallthru
        _
      %p815 = scmp.le.s32.totalorder 2, %s26
      // Predicated region
      $region93: #{tpu_custom_call.1} parent=5 // pred_check
        %p816 = pneg %p815
      $region94: #{tpu_custom_call.1} parent=5 // pred_check_branch
        %818 = sbr.rel (%p816) target = $region96
      $region95: #{tpu_custom_call.1} parent=5 // pred_region
        %s819 = ssub.s32 %s26, 2
        // Predicated region
        $region97: #{tpu_custom_call.1} parent=95 // pred_check
          %p820 = pneg %p291
        $region98: #{tpu_custom_call.1} parent=95 // pred_check_branch
          %822 = sbr.rel (%p820) target = $region100
        $region99: #{tpu_custom_call.1} parent=95 // pred_region
          %s823 = sand.u32 %s276, 1
          %s824 = scalar_lea.sflag [#allocation4], %s823
          %s825 = sand.u32 %s276, 1
          %s826 = smul.addr %s825, 24
          %s827 = scalar_lea.vmem [#allocation13], %s826
          %829 = dma.done %s824, 384
        $region100: #{tpu_custom_call.1} parent=95 // pred_fallthru
          _
      $region96: #{tpu_custom_call.1} parent=5 // pred_fallthru
        _
    $region6: #{tpu_custom_call.1} parent=1 // loop_footer
      %s30 = sadd.s32 1, %s26
    $region7: #{tpu_custom_call.1} parent=1 // loop_footer_branch
      %25 = sbr.rel target = $region3
    $region8: #{tpu_custom_call.1} parent=1 // loop_exit
      _
    %830 = vsyncpa [#allocation3], 1
    %s831 = scalar_lea.sflag [#allocation3], 1
    %832 = vsyncpa %s831, 1
    %833 = vsyncpa [#allocation6], 1
    %834 = vsyncpa [#allocation9], 1
    %835 = vsyncpa [#allocation12], 1
    %836 = vsyncpa [#allocation4], 1
    %s837 = scalar_lea.sflag [#allocation4], 1
    %838 = vsyncpa %s837, 1

// kernel: tpu_custom_call.1
$region0: #{tpu_custom_call.1}
  #allocation0 [shape = 'u32[]', space=smem, size = 0x4, offset = 0x4, fixed_abs, tag = 'smem constant byte address 0x4 - core index']
  #allocation1 [shape = 'u32[72,128]{1,0:T(1,128)}', space=vmem, size = 0x9000, scoped, tag = 'internal scratch']
  %s0 = inlined_call_operand.hbm [shape: f32[48,128], index: 0, kind: input, shape index: {}]
  %s1 = inlined_call_operand.hbm [shape: f32[128,128], index: 1, kind: input, shape index: {}]
  %s2 = inlined_call_operand.vmem [shape: f32[1,128], index: 2, kind: input, shape index: {}]
  %s3 = inlined_call_operand.hbm [shape: f32[64,64], index: 3, kind: input, shape index: {}]
  %s4 = inlined_call_operand.vmem [shape: f32[1,64], index: 4, kind: input, shape index: {}]
  %s5 = inlined_call_operand.hbm [shape: f32[32,32], index: 5, kind: input, shape index: {}]
  %s6 = inlined_call_operand.vmem [shape: f32[1,32], index: 6, kind: input, shape index: {}]
  %s7 = inlined_call_operand.hbm [shape: f32[64,64], index: 7, kind: input, shape index: {}]
  %s8 = inlined_call_operand.vmem [shape: f32[1,64], index: 8, kind: input, shape index: {}]
  %s9 = inlined_call_operand.hbm [shape: f32[64,128], index: 9, kind: input, shape index: {}]
  %s10 = inlined_call_operand.vmem [shape: f32[1,128], index: 10, kind: input, shape index: {}]
  %s11 = inlined_call_operand.hbm [shape: f32[48,128], index: 11, kind: output, shape index: {}]
  %s12 = sld [smem:[#allocation0]]
  $region101: #{tpu_custom_call.1} parent=0
    _
  %s14 = ssub.s32 1, %s12
  %s15 = scalar_select 0, %s14, %s12
  $region1: #{tpu_custom_call.1} parent=0
    #allocation2 [shape = 'u8[24576]{0}', space=vmem, size = 0x6000, scoped, tag = 'input window, operand 0']
    #allocation3 [shape = 's32[2]{0}', space=sflag, size = 0x8, scoped, tag = 'scoped memory for tpu_custom_call.1']
    #allocation4 [shape = 's32[2]{0}', space=sflag, size = 0x8, scoped, tag = 'scoped memory for tpu_custom_call.1']
    #allocation5 [shape = 'u8[65536]{0}', space=vmem, size = 0x10000, scoped, tag = 'input window, operand 1, single buffered']
    #allocation6 [shape = 's32[1]{0}', space=sflag, size = 0x4, scoped, tag = 'scoped memory for tpu_custom_call.1']
    #allocation7 [shape = 'u8[32768]{0}', space=vmem, size = 0x8000, scoped, tag = 'input window, operand 3, single buffered']
    #allocation8 [shape = 'u8[16384]{0}', space=vmem, size = 0x4000, scoped, tag = 'input window, operand 5, single buffered']
    #allocation9 [shape = 's32[1]{0}', space=sflag, size = 0x4, scoped, tag = 'scoped memory for tpu_custom_call.1']
    #allocation10 [shape = 'u8[32768]{0}', space=vmem, size = 0x8000, scoped, tag = 'input window, operand 7, single buffered']
    #allocation11 [shape = 'u8[32768]{0}', space=vmem, size = 0x8000, scoped, tag = 'input window, operand 9, single buffered']
    #allocation12 [shape = 's32[1]{0}', space=sflag, size = 0x4, scoped, tag = 'scoped memory for tpu_custom_call.1']
    #allocation13 [shape = 'u8[24576]{0}', space=vmem, size = 0x6000, scoped, tag = 'output window, operand 0']
    %16 = vsyncpa [#allocation3], 0
    %s17 = scalar_lea.sflag [#allocation3], 1
    %18 = vsyncpa %s17, 0
    %19 = vsyncpa [#allocation6], 0
    %20 = vsyncpa [#allocation9], 0
    %21 = vsyncpa [#allocation12], 0
    %22 = vsyncpa [#allocation4], 0
    %s23 = scalar_lea.sflag [#allocation4], 1
    %24 = vsyncpa %s23, 0
    loop: start=0, step=1, limit=4
    $region2: #{tpu_custom_call.1} parent=1 // loop_pre_header
      _
    $region3: #{tpu_custom_call.1} parent=1 // loop_header
      %s26 = sphi 0, %s30
      %p27 = scmp.ge.s32.totalorder %s26, 4
      %s36 = sphi 0, %s38
      %s39 = sphi 0, %s36
      %s40 = sphi 0, %s39
      %s56 = sphi 0, %s40
      %s60 = sphi 0, %s60
      %s62 = sphi 0, %s60
      %s63 = sphi 0, %s62
      %s77 = sphi 0, %s63
      %s81 = sphi 0, %s81
      %s83 = sphi 0, %s81
      %s84 = sphi 0, %s83
      %s98 = sphi 0, %s84
      %s102 = sphi 0, %s102
      %s104 = sphi 0, %s102
      %s105 = sphi 0, %s104
      %s119 = sphi 0, %s105
      %s123 = sphi 0, %s123
      %s125 = sphi 0, %s123
      %s126 = sphi 0, %s125
      %s140 = sphi 0, %s126
      %s144 = sphi 0, %s144
      %s146 = sphi 0, %s144
      %s147 = sphi 0, %s146
      %s161 = sphi 0, %s147
      %s165 = sphi 0, %s165
      %s167 = sphi 0, %s165
      %s168 = sphi 0, %s167
      %s182 = sphi 0, %s168
      %s186 = sphi 0, %s186
      %s188 = sphi 0, %s186
      %s189 = sphi 0, %s188
      %s203 = sphi 0, %s189
      %s207 = sphi 0, %s207
      %s209 = sphi 0, %s207
      %s210 = sphi 0, %s209
      %s224 = sphi 0, %s210
      %s228 = sphi 0, %s228
      %s230 = sphi 0, %s228
      %s231 = sphi 0, %s230
      %s245 = sphi 0, %s231
      %s249 = sphi 0, %s249
      %s251 = sphi 0, %s249
      %s252 = sphi 0, %s251
      %s266 = sphi 0, %s252
      %s272 = sphi 0, %s274
      %s275 = sphi 0, %s272
      %s276 = sphi 0, %s275
      %s292 = sphi 0, %s276
    $region4: #{tpu_custom_call.1} parent=1 // loop_header_branch
      %29 = sbr.rel (%p27) target = $region8
    $region5: #{tpu_custom_call.1} parent=1 // loop_body
      %s31 = ssub.s32 %s26, 1
      %s32 = ssub.s32 %s26, 2
      %s33 = sadd.s32 %s26, 1
      %s34 = ssub.s32 %s26, %s33
      %p35 = scmp.eq.s32.totalorder %s34, 0
      %s37 = sadd.s32 %s36, 1
      %s38 = scalar_select %p35, %s36, %s37
      %p41 = pneg %p35
      %p42 = scmp.eq.s32.totalorder %s26, 1
      %p43 = por %p41, %p42
      %p44 = scmp.ne.s32.totalorder %s36, %s39
      %p45 = scmp.eq.s32.totalorder %s26, 0
      %p46 = por %p44, %p45
      %p47 = scmp.ne.s32.totalorder %s36, %s39
      %p48 = scmp.eq.s32.totalorder %s31, 1
      %p49 = por %p47, %p48
      %p50 = scmp.ne.s32.totalorder %s39, %s40
      %p51 = scmp.eq.s32.totalorder %s31, 0
      %p52 = por %p50, %p51
      %p53 = scmp.ne.s32.totalorder %s39, %s40
      %p54 = scmp.eq.s32.totalorder %s32, 1
      %p55 = por %p53, %p54
      %p57 = scmp.ne.s32.totalorder %s40, %s56
      %p58 = scmp.eq.s32.totalorder %s32, 0
      %p59 = por %p57, %p58
      %s61 = sadd.s32 %s60, 1
      %p64 = scmp.eq.s32.totalorder %s26, 1
      %p65 = scmp.ne.s32.totalorder %s60, %s62
      %p66 = scmp.eq.s32.totalorder %s26, 0
      %p67 = por %p65, %p66
      %p68 = scmp.ne.s32.totalorder %s60, %s62
      %p69 = scmp.eq.s32.totalorder %s31, 1
      %p70 = por %p68, %p69
      %p71 = scmp.ne.s32.totalorder %s62, %s63
      %p72 = scmp.eq.s32.totalorder %s31, 0
      %p73 = por %p71, %p72
      %p74 = scmp.ne.s32.totalorder %s62, %s63
      %p75 = scmp.eq.s32.totalorder %s32, 1
      %p76 = por %p74, %p75
      %p78 = scmp.ne.s32.totalorder %s63, %s77
      %p79 = scmp.eq.s32.totalorder %s32, 0
      %p80 = por %p78, %p79
      %s82 = sadd.s32 %s81, 1
      %p85 = scmp.eq.s32.totalorder %s26, 1
      %p86 = scmp.ne.s32.totalorder %s81, %s83
      %p87 = scmp.eq.s32.totalorder %s26, 0
      %p88 = por %p86, %p87
      %p89 = scmp.ne.s32.totalorder %s81, %s83
      %p90 = scmp.eq.s32.totalorder %s31, 1
      %p91 = por %p89, %p90
      %p92 = scmp.ne.s32.totalorder %s83, %s84
      %p93 = scmp.eq.s32.totalorder %s31, 0
      %p94 = por %p92, %p93
      %p95 = scmp.ne.s32.totalorder %s83, %s84
      %p96 = scmp.eq.s32.totalorder %s32, 1
      %p97 = por %p95, %p96
      %p99 = scmp.ne.s32.totalorder %s84, %s98
      %p100 = scmp.eq.s32.totalorder %s32, 0
      %p101 = por %p99, %p100
      %s103 = sadd.s32 %s102, 1
      %p106 = scmp.eq.s32.totalorder %s26, 1
      %p107 = scmp.ne.s32.totalorder %s102, %s104
      %p108 = scmp.eq.s32.totalorder %s26, 0
      %p109 = por %p107, %p108
      %p110 = scmp.ne.s32.totalorder %s102, %s104
      %p111 = scmp.eq.s32.totalorder %s31, 1
      %p112 = por %p110, %p111
      %p113 = scmp.ne.s32.totalorder %s104, %s105
      %p114 = scmp.eq.s32.totalorder %s31, 0
      %p115 = por %p113, %p114
      %p116 = scmp.ne.s32.totalorder %s104, %s105
      %p117 = scmp.eq.s32.totalorder %s32, 1
      %p118 = por %p116, %p117
      %p120 = scmp.ne.s32.totalorder %s105, %s119
      %p121 = scmp.eq.s32.totalorder %s32, 0
      %p122 = por %p120, %p121
      %s124 = sadd.s32 %s123, 1
      %p127 = scmp.eq.s32.totalorder %s26, 1
      %p128 = scmp.ne.s32.totalorder %s123, %s125
      %p129 = scmp.eq.s32.totalorder %s26, 0
      %p130 = por %p128, %p129
      %p131 = scmp.ne.s32.totalorder %s123, %s125
      %p132 = scmp.eq.s32.totalorder %s31, 1
      %p133 = por %p131, %p132
      %p134 = scmp.ne.s32.totalorder %s125, %s126
      %p135 = scmp.eq.s32.totalorder %s31, 0
      %p136 = por %p134, %p135
      %p137 = scmp.ne.s32.totalorder %s125, %s126
      %p138 = scmp.eq.s32.totalorder %s32, 1
      %p139 = por %p137, %p138
      %p141 = scmp.ne.s32.totalorder %s126, %s140
      %p142 = scmp.eq.s32.totalorder %s32, 0
      %p143 = por %p141, %p142
      %s145 = sadd.s32 %s144, 1
      %p148 = scmp.eq.s32.totalorder %s26, 1
      %p149 = scmp.ne.s32.totalorder %s144, %s146
      %p150 = scmp.eq.s32.totalorder %s26, 0
      %p151 = por %p149, %p150
      %p152 = scmp.ne.s32.totalorder %s144, %s146
      %p153 = scmp.eq.s32.totalorder %s31, 1
      %p154 = por %p152, %p153
      %p155 = scmp.ne.s32.totalorder %s146, %s147
      %p156 = scmp.eq.s32.totalorder %s31, 0
      %p157 = por %p155, %p156
      %p158 = scmp.ne.s32.totalorder %s146, %s147
      %p159 = scmp.eq.s32.totalorder %s32, 1
      %p160 = por %p158, %p159
      %p162 = scmp.ne.s32.totalorder %s147, %s161
      %p163 = scmp.eq.s32.totalorder %s32, 0
      %p164 = por %p162, %p163
      %s166 = sadd.s32 %s165, 1
      %p169 = scmp.eq.s32.totalorder %s26, 1
      %p170 = scmp.ne.s32.totalorder %s165, %s167
      %p171 = scmp.eq.s32.totalorder %s26, 0
      %p172 = por %p170, %p171
      %p173 = scmp.ne.s32.totalorder %s165, %s167
      %p174 = scmp.eq.s32.totalorder %s31, 1
      %p175 = por %p173, %p174
      %p176 = scmp.ne.s32.totalorder %s167, %s168
      %p177 = scmp.eq.s32.totalorder %s31, 0
      %p178 = por %p176, %p177
      %p179 = scmp.ne.s32.totalorder %s167, %s168
      %p180 = scmp.eq.s32.totalorder %s32, 1
      %p181 = por %p179, %p180
      %p183 = scmp.ne.s32.totalorder %s168, %s182
      %p184 = scmp.eq.s32.totalorder %s32, 0
      %p185 = por %p183, %p184
      %s187 = sadd.s32 %s186, 1
      %p190 = scmp.eq.s32.totalorder %s26, 1
      %p191 = scmp.ne.s32.totalorder %s186, %s188
      %p192 = scmp.eq.s32.totalorder %s26, 0
      %p193 = por %p191, %p192
      %p194 = scmp.ne.s32.totalorder %s186, %s188
      %p195 = scmp.eq.s32.totalorder %s31, 1
      %p196 = por %p194, %p195
      %p197 = scmp.ne.s32.totalorder %s188, %s189
      %p198 = scmp.eq.s32.totalorder %s31, 0
      %p199 = por %p197, %p198
      %p200 = scmp.ne.s32.totalorder %s188, %s189
      %p201 = scmp.eq.s32.totalorder %s32, 1
      %p202 = por %p200, %p201
      %p204 = scmp.ne.s32.totalorder %s189, %s203
      %p205 = scmp.eq.s32.totalorder %s32, 0
      %p206 = por %p204, %p205
      %s208 = sadd.s32 %s207, 1
      %p211 = scmp.eq.s32.totalorder %s26, 1
      %p212 = scmp.ne.s32.totalorder %s207, %s209
      %p213 = scmp.eq.s32.totalorder %s26, 0
      %p214 = por %p212, %p213
      %p215 = scmp.ne.s32.totalorder %s207, %s209
      %p216 = scmp.eq.s32.totalorder %s31, 1
      %p217 = por %p215, %p216
      %p218 = scmp.ne.s32.totalorder %s209, %s210
      %p219 = scmp.eq.s32.totalorder %s31, 0
      %p220 = por %p218, %p219
      %p221 = scmp.ne.s32.totalorder %s209, %s210
      %p222 = scmp.eq.s32.totalorder %s32, 1
      %p223 = por %p221, %p222
      %p225 = scmp.ne.s32.totalorder %s210, %s224
      %p226 = scmp.eq.s32.totalorder %s32, 0
      %p227 = por %p225, %p226
      %s229 = sadd.s32 %s228, 1
      %p232 = scmp.eq.s32.totalorder %s26, 1
      %p233 = scmp.ne.s32.totalorder %s228, %s230
      %p234 = scmp.eq.s32.totalorder %s26, 0
      %p235 = por %p233, %p234
      %p236 = scmp.ne.s32.totalorder %s228, %s230
      %p237 = scmp.eq.s32.totalorder %s31, 1
      %p238 = por %p236, %p237
      %p239 = scmp.ne.s32.totalorder %s230, %s231
      %p240 = scmp.eq.s32.totalorder %s31, 0
      %p241 = por %p239, %p240
      %p242 = scmp.ne.s32.totalorder %s230, %s231
      %p243 = scmp.eq.s32.totalorder %s32, 1
      %p244 = por %p242, %p243
      %p246 = scmp.ne.s32.totalorder %s231, %s245
      %p247 = scmp.eq.s32.totalorder %s32, 0
      %p248 = por %p246, %p247
      %s250 = sadd.s32 %s249, 1
      %p253 = scmp.eq.s32.totalorder %s26, 1
      %p254 = scmp.ne.s32.totalorder %s249, %s251
      %p255 = scmp.eq.s32.totalorder %s26, 0
      %p256 = por %p254, %p255
      %p257 = scmp.ne.s32.totalorder %s249, %s251
      %p258 = scmp.eq.s32.totalorder %s31, 1
      %p259 = por %p257, %p258
      %p260 = scmp.ne.s32.totalorder %s251, %s252
      %p261 = scmp.eq.s32.totalorder %s31, 0
      %p262 = por %p260, %p261
      %p263 = scmp.ne.s32.totalorder %s251, %s252
      %p264 = scmp.eq.s32.totalorder %s32, 1
      %p265 = por %p263, %p264
      %p267 = scmp.ne.s32.totalorder %s252, %s266
      %p268 = scmp.eq.s32.totalorder %s32, 0
      %p269 = por %p267, %p268
      %s270 = ssub.s32 %s26, %s33
      %p271 = scmp.eq.s32.totalorder %s270, 0
      %s273 = sadd.s32 %s272, 1
      %s274 = scalar_select %p271, %s272, %s273
      %p277 = pneg %p271
      %p278 = scmp.eq.s32.totalorder %s26, 1
      %p279 = por %p277, %p278
      %p280 = scmp.ne.s32.totalorder %s272, %s275
      %p281 = scmp.eq.s32.totalorder %s26, 0
      %p282 = por %p280, %p281
      %p283 = scmp.ne.s32.totalorder %s272, %s275
      %p284 = scmp.eq.s32.totalorder %s31, 1
      %p285 = por %p283, %p284
      %p286 = scmp.ne.s32.totalorder %s275, %s276
      %p287 = scmp.eq.s32.totalorder %s31, 0
      %p288 = por %p286, %p287
      %p289 = scmp.ne.s32.totalorder %s275, %s276
      %p290 = scmp.eq.s32.totalorder %s32, 1
      %p291 = por %p289, %p290
      %p293 = scmp.ne.s32.totalorder %s276, %s292
      %p294 = scmp.eq.s32.totalorder %s32, 0
      %p295 = por %p293, %p294
      %p296 = scmp.le.s32.totalorder 1, %s26
      %p297 = scmp.lt.s32.totalorder %s26, 3
      %p298 = pnand %p296, %p297
      %p299 = pneg %p298
      // Predicated region
      $region9: #{tpu_custom_call.1} parent=5 // pred_check
        _
      $region10: #{tpu_custom_call.1} parent=5 // pred_check_branch
        %301 = sbr.rel (%p298) target = $region12
      $region11: #{tpu_custom_call.1} parent=5 // pred_region
        %s302 = ssub.s32 %s26, 1
        // Predicated region
        $region13: #{tpu_custom_call.1} parent=11 // pred_check
          %p303 = pneg %p73
        $region14: #{tpu_custom_call.1} parent=11 // pred_check_branch
          %305 = sbr.rel (%p303) target = $region16
        $region15: #{tpu_custom_call.1} parent=11 // pred_region
          %307 = vsyncadd [#allocation6], 0
          %s308 = sshll.u32 %s1, 4
          %s309 = int_to_ptr.hbm [resolvable:$true] %s308
          %s310 = sshll.u32 [#allocation5], 4
          %s311 = int_to_ptr.vmem [resolvable:$true] %s310
          %316 = dma.hbm_to_vmem [thread:$0]  %s309, 2048, %s311, [#allocation6], 128, 128, 8
        $region16: #{tpu_custom_call.1} parent=11 // pred_fallthru
          _
        // Predicated region
        $region17: #{tpu_custom_call.1} parent=11 // pred_check
          %p317 = pneg %p94
        $region18: #{tpu_custom_call.1} parent=11 // pred_check_branch
          %319 = sbr.rel (%p317) target = $region20
        $region19: #{tpu_custom_call.1} parent=11 // pred_region
          _
        $region20: #{tpu_custom_call.1} parent=11 // pred_fallthru
          _
        // Predicated region
        $region21: #{tpu_custom_call.1} parent=11 // pred_check
          %p320 = pneg %p115
        $region22: #{tpu_custom_call.1} parent=11 // pred_check_branch
          %322 = sbr.rel (%p320) target = $region24
        $region23: #{tpu_custom_call.1} parent=11 // pred_region
          %324 = vsyncadd [#allocation6], 0
          %s325 = sshll.u32 %s3, 4
          %s326 = int_to_ptr.hbm [resolvable:$true] %s325
          %s327 = sshll.u32 [#allocation7], 4
          %s328 = int_to_ptr.vmem [resolvable:$true] %s327
          %333 = dma.hbm_to_vmem [thread:$0]  %s326, 1024, %s328, [#allocation6], 128, 128, 8
        $region24: #{tpu_custom_call.1} parent=11 // pred_fallthru
          _
        // Predicated region
        $region25: #{tpu_custom_call.1} parent=11 // pred_check
          %p334 = pneg %p136
        $region26: #{tpu_custom_call.1} parent=11 // pred_check_branch
          %336 = sbr.rel (%p334) target = $region28
        $region27: #{tpu_custom_call.1} parent=11 // pred_region
          _
        $region28: #{tpu_custom_call.1} parent=11 // pred_fallthru
          _
        // Predicated region
        $region29: #{tpu_custom_call.1} parent=11 // pred_check
          %p337 = pneg %p157
        $region30: #{tpu_custom_call.1} parent=11 // pred_check_branch
          %339 = sbr.rel (%p337) target = $region32
        $region31: #{tpu_custom_call.1} parent=11 // pred_region
          %341 = vsyncadd [#allocation9], 0
          %s342 = sshll.u32 %s5, 4
          %s343 = int_to_ptr.hbm [resolvable:$true] %s342
          %s344 = sshll.u32 [#allocation8], 4
          %s345 = int_to_ptr.vmem [resolvable:$true] %s344
          %350 = dma.hbm_to_vmem [thread:$0]  %s343, 512, %s345, [#allocation9], 128, 128, 8
        $region32: #{tpu_custom_call.1} parent=11 // pred_fallthru
          _
        // Predicated region
        $region33: #{tpu_custom_call.1} parent=11 // pred_check
          %p351 = pneg %p178
        $region34: #{tpu_custom_call.1} parent=11 // pred_check_branch
          %353 = sbr.rel (%p351) target = $region36
        $region35: #{tpu_custom_call.1} parent=11 // pred_region
          _
        $region36: #{tpu_custom_call.1} parent=11 // pred_fallthru
          _
        // Predicated region
        $region37: #{tpu_custom_call.1} parent=11 // pred_check
          %p354 = pneg %p199
        $region38: #{tpu_custom_call.1} parent=11 // pred_check_branch
          %356 = sbr.rel (%p354) target = $region40
        $region39: #{tpu_custom_call.1} parent=11 // pred_region
          %358 = vsyncadd [#allocation9], 0
          %s359 = sshll.u32 %s7, 4
          %s360 = int_to_ptr.hbm [resolvable:$true] %s359
          %s361 = sshll.u32 [#allocation10], 4
          %s362 = int_to_ptr.vmem [resolvable:$true] %s361
          %367 = dma.hbm_to_vmem [thread:$0]  %s360, 1024, %s362, [#allocation9], 128, 128, 8
        $region40: #{tpu_custom_call.1} parent=11 // pred_fallthru
          _
        // Predicated region
        $region41: #{tpu_custom_call.1} parent=11 // pred_check
          %p368 = pneg %p220
        $region42: #{tpu_custom_call.1} parent=11 // pred_check_branch
          %370 = sbr.rel (%p368) target = $region44
        $region43: #{tpu_custom_call.1} parent=11 // pred_region
          _
        $region44: #{tpu_custom_call.1} parent=11 // pred_fallthru
          _
        // Predicated region
        $region45: #{tpu_custom_call.1} parent=11 // pred_check
          %p371 = pneg %p241
        $region46: #{tpu_custom_call.1} parent=11 // pred_check_branch
          %373 = sbr.rel (%p371) target = $region48
        $region47: #{tpu_custom_call.1} parent=11 // pred_region
          %375 = vsyncadd [#allocation12], 0
          %s376 = sshll.u32 %s9, 4
          %s377 = int_to_ptr.hbm [resolvable:$true] %s376
          %s378 = sshll.u32 [#allocation11], 4
          %s379 = int_to_ptr.vmem [resolvable:$true] %s378
          %384 = dma.hbm_to_vmem [thread:$0]  %s377, 1024, %s379, [#allocation12], 128, 128, 8
        $region48: #{tpu_custom_call.1} parent=11 // pred_fallthru
          _
        // Predicated region
        $region49: #{tpu_custom_call.1} parent=11 // pred_check
          %p385 = pneg %p262
        $region50: #{tpu_custom_call.1} parent=11 // pred_check_branch
          %387 = sbr.rel (%p385) target = $region52
        $region51: #{tpu_custom_call.1} parent=11 // pred_region
          _
        $region52: #{tpu_custom_call.1} parent=11 // pred_fallthru
          _
      $region12: #{tpu_custom_call.1} parent=5 // pred_fallthru
        _
      %p388 = scmp.lt.s32.totalorder %s26, 2
      // Predicated region
      $region53: #{tpu_custom_call.1} parent=5 // pred_check
        %p389 = pneg %p388
      $region54: #{tpu_custom_call.1} parent=5 // pred_check_branch
        %391 = sbr.rel (%p389) target = $region56
      $region55: #{tpu_custom_call.1} parent=5 // pred_region
        // Predicated region
        $region57: #{tpu_custom_call.1} parent=55 // pred_check
          %p392 = pneg %p46
        $region58: #{tpu_custom_call.1} parent=55 // pred_check_branch
          %394 = sbr.rel (%p392) target = $region60
        $region59: #{tpu_custom_call.1} parent=55 // pred_region
          %s395 = sand.u32 %s36, 1
          %s396 = scalar_lea.sflag [#allocation3], %s395
          %s397 = sand.u32 %s36, 1
          %s398 = smul.addr %s397, 24
          %s399 = scalar_lea.vmem [#allocation2], %s398
          %s400 = smul.u32 3, %s26
          %402 = vsyncadd %s396, 0
          %s403 = smul.addr %s400, 8
          %s404 = scalar_lea.hbm %s0, %s403
          %s405 = sshll.u32 %s404, 4
          %s406 = int_to_ptr.hbm [resolvable:$true] %s405
          %s407 = sshll.u32 %s399, 4
          %s408 = int_to_ptr.vmem [resolvable:$true] %s407
          %413 = dma.hbm_to_vmem [thread:$0]  %s406, 384, %s408, %s396, 128, 128, 8
        $region60: #{tpu_custom_call.1} parent=55 // pred_fallthru
          _
      $region56: #{tpu_custom_call.1} parent=5 // pred_fallthru
        _
      %p414 = scmp.le.s32.totalorder 1, %s26
      %p415 = scmp.lt.s32.totalorder %s26, 3
      %p416 = pnand %p414, %p415
      %p417 = pneg %p416
      // Predicated region
      $region61: #{tpu_custom_call.1} parent=5 // pred_check
        _
      $region62: #{tpu_custom_call.1} parent=5 // pred_check_branch
        %419 = sbr.rel (%p416) target = $region64
      $region63: #{tpu_custom_call.1} parent=5 // pred_region
        %s420 = ssub.s32 %s26, 1
        %s421 = sand.u32 %s39, 1
        %s422 = scalar_lea.sflag [#allocation3], %s421
        %s423 = sand.u32 %s39, 1
        %s424 = smul.addr %s423, 24
        %s425 = scalar_lea.vmem [#allocation2], %s424
        // Predicated region
        $region65: #{tpu_custom_call.1} parent=63 // pred_check
          %p426 = pneg %p52
        $region66: #{tpu_custom_call.1} parent=63 // pred_check_branch
          %428 = sbr.rel (%p426) target = $region68
        $region67: #{tpu_custom_call.1} parent=63 // pred_region
          %430 = dma.done %s422, 384
        $region68: #{tpu_custom_call.1} parent=63 // pred_fallthru
          _
        // Predicated region
        $region69: #{tpu_custom_call.1} parent=63 // pred_check
          %p431 = pneg %p73
        $region70: #{tpu_custom_call.1} parent=63 // pred_check_branch
          %433 = sbr.rel (%p431) target = $region72
        $region71: #{tpu_custom_call.1} parent=63 // pred_region
          %435 = dma.done [#allocation6], 2048
        $region72: #{tpu_custom_call.1} parent=63 // pred_fallthru
          _
        // Predicated region
        $region73: #{tpu_custom_call.1} parent=63 // pred_check
          %p436 = pneg %p115
        $region74: #{tpu_custom_call.1} parent=63 // pred_check_branch
          %438 = sbr.rel (%p436) target = $region76
        $region75: #{tpu_custom_call.1} parent=63 // pred_region
          %440 = dma.done [#allocation6], 1024
        $region76: #{tpu_custom_call.1} parent=63 // pred_fallthru
          _
        // Predicated region
        $region77: #{tpu_custom_call.1} parent=63 // pred_check
          %p441 = pneg %p157
        $region78: #{tpu_custom_call.1} parent=63 // pred_check_branch
          %443 = sbr.rel (%p441) target = $region80
        $region79: #{tpu_custom_call.1} parent=63 // pred_region
          %445 = dma.done [#allocation9], 512
        $region80: #{tpu_custom_call.1} parent=63 // pred_fallthru
          _
        // Predicated region
        $region81: #{tpu_custom_call.1} parent=63 // pred_check
          %p446 = pneg %p199
        $region82: #{tpu_custom_call.1} parent=63 // pred_check_branch
          %448 = sbr.rel (%p446) target = $region84
        $region83: #{tpu_custom_call.1} parent=63 // pred_region
          %450 = dma.done [#allocation9], 1024
        $region84: #{tpu_custom_call.1} parent=63 // pred_fallthru
          _
        // Predicated region
        $region85: #{tpu_custom_call.1} parent=63 // pred_check
          %p451 = pneg %p241
        $region86: #{tpu_custom_call.1} parent=63 // pred_check_branch
          %453 = sbr.rel (%p451) target = $region88
        $region87: #{tpu_custom_call.1} parent=63 // pred_region
          %455 = dma.done [#allocation12], 1024
        $region88: #{tpu_custom_call.1} parent=63 // pred_fallthru
          _
        %s456 = sand.u32 %s39, 1
        %s457 = scalar_lea.sflag [#allocation3], %s456
        %s458 = sand.u32 %s39, 1
        %s459 = smul.addr %s458, 24
        %s460 = scalar_lea.vmem [#allocation2], %s459
        %p461 = pneg %p52
        %p462 = pneg %p49
        %p463 = pneg %p73
        %p464 = pneg %p70
        %p465 = pneg %p94
        %p466 = pneg %p91
        %p467 = pneg %p115
        %p468 = pneg %p112
        %p469 = pneg %p136
        %p470 = pneg %p133
        %p471 = pneg %p157
        %p472 = pneg %p154
        %p473 = pneg %p178
        %p474 = pneg %p175
        %p475 = pneg %p199
        %p476 = pneg %p196
        %p477 = pneg %p220
        %p478 = pneg %p217
        %p479 = pneg %p241
        %p480 = pneg %p238
        %p481 = pneg %p262
        %p482 = pneg %p259
        %p483 = pneg %p288
        %p484 = pneg %p285
        %s485 = sand.u32 %s275, 1
        %s486 = scalar_lea.sflag [#allocation4], %s485
        %s487 = sand.u32 %s275, 1
        %s488 = smul.addr %s487, 24
        %s489 = scalar_lea.vmem [#allocation13], %s488
        %s490 = smul.u32 3, %s31
        %s491 = smul.u32 3, %s31
        %v492 = vld [vmem:[%s425] sm:$0xff]
        %v493 = vld [vmem:[%s425 + $0x8] sm:$0xff]
        %v494 = vld [vmem:[%s425 + $0x10] sm:$0xff]
        %v495 = vld [vmem:[#allocation5] sm:$0xff]
        %v496 = vld [vmem:[#allocation5 + $0x8] sm:$0xff]
        %v497 = vld [vmem:[#allocation5 + $0x10] sm:$0xff]
        %v498 = vld [vmem:[#allocation5 + $0x18] sm:$0xff]
        %v499 = vld [vmem:[#allocation5 + $0x20] sm:$0xff]
        %v500 = vld [vmem:[#allocation5 + $0x28] sm:$0xff]
        %v501 = vld [vmem:[#allocation5 + $0x30] sm:$0xff]
        %v502 = vld [vmem:[#allocation5 + $0x38] sm:$0xff]
        %v503 = vld [vmem:[#allocation5 + $0x40] sm:$0xff]
        %v504 = vld [vmem:[#allocation5 + $0x48] sm:$0xff]
        %v505 = vld [vmem:[#allocation5 + $0x50] sm:$0xff]
        %v506 = vld [vmem:[#allocation5 + $0x58] sm:$0xff]
        %v507 = vld [vmem:[#allocation5 + $0x60] sm:$0xff]
        %v508 = vld [vmem:[#allocation5 + $0x68] sm:$0xff]
        %v509 = vld [vmem:[#allocation5 + $0x70] sm:$0xff]
        %v510 = vld [vmem:[#allocation5 + $0x78] sm:$0xff]
        %v511 = vld [vmem:[%s2] sm:$0x1]
        %v513 = vperm.slane %v511, 0
        %515 = vmatpush.msra.mxu0 %v510
        %516 = vmatpush.msra.mxu0 %v509
        %517 = vmatpush.msra.mxu0 %v508
        %518 = vmatpush.msra.mxu0 %v507
        %519 = vmatpush.msra.mxu0 %v506
        %520 = vmatpush.msra.mxu0 %v505
        %521 = vmatpush.msra.mxu0 %v504
        %522 = vmatpush.msra.mxu0 %v503
        %523 = vmatpush.msra.mxu0 %v502
        %524 = vmatpush.msra.mxu0 %v501
        %525 = vmatpush.msra.mxu0 %v500
        %526 = vmatpush.msra.mxu0 %v499
        %527 = vmatpush.msra.mxu0 %v498
        %528 = vmatpush.msra.mxu0 %v497
        %529 = vmatpush.msra.mxu0 %v496
        %530 = vmatpush.msra.mxu0 %v495
        %531 = vmatmul.f32.gmra.mxu0 %v492
        %v532 = vpop.f32.mrf.mxu0
        %v533 = vadd.f32 %v513, %v532
        %534 = vmatmul.f32.gmra.mxu0 %v493
        %v535 = vpop.f32.mrf.mxu0
        %v536 = vadd.f32 %v513, %v535
        %537 = vmatmul.f32.gmra.mxu0 %v494
        %v538 = vpop.f32.mrf.mxu0
        %v539 = vadd.f32 %v513, %v538
        %540 = vdwg.mxu0
        %v541 = vmax.f32 %v533, 0.0
        %v542 = vmax.f32 %v536, 0.0
        %v543 = vmax.f32 %v539, 0.0
        %547 = vrot.lane.b32.xlu0 %v541, 64
        %v548 = vpop.permute.xlu0 %547
        %549 = vrot.lane.b32.xlu0 %v542, 64
        %v550 = vpop.permute.xlu0 %549
        %551 = vrot.lane.b32.xlu0 %v543, 64
        %v552 = vpop.permute.xlu0 %551
        %v556 = vmax.f32 %v541, %v548
        %v557 = vmax.f32 %v542, %v550
        %v558 = vmax.f32 %v543, %v552
        %v559 = vld [vmem:[#allocation7] sm:$0xff]
        %v560 = vld [vmem:[#allocation7 + $0x8] sm:$0xff]
        %v561 = vld [vmem:[#allocation7 + $0x10] sm:$0xff]
        %v562 = vld [vmem:[#allocation7 + $0x18] sm:$0xff]
        %v563 = vld [vmem:[#allocation7 + $0x20] sm:$0xff]
        %v564 = vld [vmem:[#allocation7 + $0x28] sm:$0xff]
        %v565 = vld [vmem:[#allocation7 + $0x30] sm:$0xff]
        %v566 = vld [vmem:[#allocation7 + $0x38] sm:$0xff]
        %v567 = vld [vmem:[%s4] sm:$0x1]
        %v569 = vperm.slane %v567, 0
        %vm571 = vcmask 523264
        %v573 = vsel %vm571, %v556, 0
        %v576 = vsel %vm571, %v557, 0
        %v579 = vsel %vm571, %v558, 0
        %581 = vmatpush.msra.mxu0 0.0
        %582 = vmatpush.msra.mxu0 0.0
        %583 = vmatpush.msra.mxu0 0.0
        %584 = vmatpush.msra.mxu0 0.0
        %585 = vmatpush.msra.mxu0 0.0
        %586 = vmatpush.msra.mxu0 0.0
        %587 = vmatpush.msra.mxu0 0.0
        %588 = vmatpush.msra.mxu0 0.0
        %589 = vmatpush.msra.mxu0 %v566
        %590 = vmatpush.msra.mxu0 %v565
        %591 = vmatpush.msra.mxu0 %v564
        %592 = vmatpush.msra.mxu0 %v563
        %593 = vmatpush.msra.mxu0 %v562
        %594 = vmatpush.msra.mxu0 %v561
        %595 = vmatpush.msra.mxu0 %v560
        %596 = vmatpush.msra.mxu0 %v559
        %597 = vmatmul.f32.gmra.mxu0 %v573
        %v598 = vpop.f32.mrf.mxu0
        %v599 = vadd.f32 %v569, %v598
        %600 = vmatmul.f32.gmra.mxu0 %v576
        %v601 = vpop.f32.mrf.mxu0
        %v602 = vadd.f32 %v569, %v601
        %603 = vmatmul.f32.gmra.mxu0 %v579
        %v604 = vpop.f32.mrf.mxu0
        %v605 = vadd.f32 %v569, %v604
        %606 = vdwg.mxu0
        %v607 = vmax.f32 %v599, 0.0
        %v608 = vmax.f32 %v602, 0.0
        %v609 = vmax.f32 %v605, 0.0
        %613 = vrot.lane.b32.xlu0 %v607, 96
        %v614 = vpop.permute.xlu0 %613
        %615 = vrot.lane.b32.xlu0 %v608, 96
        %v616 = vpop.permute.xlu0 %615
        %617 = vrot.lane.b32.xlu0 %v609, 96
        %v618 = vpop.permute.xlu0 %617
        %v622 = vmax.f32 %v607, %v614
        %v623 = vmax.f32 %v608, %v616
        %v624 = vmax.f32 %v609, %v618
        %v625 = vld [vmem:[#allocation8] sm:$0xff]
        %v626 = vld [vmem:[#allocation8 + $0x8] sm:$0xff]
        %v627 = vld [vmem:[#allocation8 + $0x10] sm:$0xff]
        %v628 = vld [vmem:[#allocation8 + $0x18] sm:$0xff]
        %v629 = vld [vmem:[%s6] sm:$0x1]
        %v631 = vperm.slane %v629, 0
        %vm633 = vcmask 261120
        %v635 = vsel %vm633, %v622, 0
        %v638 = vsel %vm633, %v623, 0
        %v641 = vsel %vm633, %v624, 0
        %643 = vmatpush.msra.mxu0 0.0
        %644 = vmatpush.msra.mxu0 0.0
        %645 = vmatpush.msra.mxu0 0.0
        %646 = vmatpush.msra.mxu0 0.0
        %647 = vmatpush.msra.mxu0 0.0
        %648 = vmatpush.msra.mxu0 0.0
        %649 = vmatpush.msra.mxu0 0.0
        %650 = vmatpush.msra.mxu0 0.0
        %651 = vmatpush.msra.mxu0 0.0
        %652 = vmatpush.msra.mxu0 0.0
        %653 = vmatpush.msra.mxu0 0.0
        %654 = vmatpush.msra.mxu0 0.0
        %655 = vmatpush.msra.mxu0 %v628
        %656 = vmatpush.msra.mxu0 %v627
        %657 = vmatpush.msra.mxu0 %v626
        %658 = vmatpush.msra.mxu0 %v625
        %659 = vmatmul.f32.gmra.mxu0 %v635
        %v660 = vpop.f32.mrf.mxu0
        %v661 = vadd.f32 %v631, %v660
        %662 = vmatmul.f32.gmra.mxu0 %v638
        %v663 = vpop.f32.mrf.mxu0
        %v664 = vadd.f32 %v631, %v663
        %665 = vmatmul.f32.gmra.mxu0 %v641
        %v666 = vpop.f32.mrf.mxu0
        %v667 = vadd.f32 %v631, %v666
        %668 = vdwg.mxu0
        %v669 = vmax.f32 %v661, 0.0
        %v670 = vmax.f32 %v664, 0.0
        %v671 = vmax.f32 %v667, 0.0
        %675 = vrot.lane.b32.xlu0 %v669, 32
        %v676 = vpop.permute.xlu0 %675
        %677 = vrot.lane.b32.xlu0 %v670, 32
        %v678 = vpop.permute.xlu0 %677
        %679 = vrot.lane.b32.xlu0 %v671, 32
        %v680 = vpop.permute.xlu0 %679
        %v684 = vsel %vm633, %v669, %v676
        %v685 = vsel %vm633, %v670, %v678
        %v686 = vsel %vm633, %v671, %v680
        %v687 = vadd.f32 %v607, %v684
        %v688 = vadd.f32 %v608, %v685
        %v689 = vadd.f32 %v609, %v686
        %v690 = vld [vmem:[#allocation10] sm:$0xff]
        %v691 = vld [vmem:[#allocation10 + $0x8] sm:$0xff]
        %v692 = vld [vmem:[#allocation10 + $0x10] sm:$0xff]
        %v693 = vld [vmem:[#allocation10 + $0x18] sm:$0xff]
        %v694 = vld [vmem:[#allocation10 + $0x20] sm:$0xff]
        %v695 = vld [vmem:[#allocation10 + $0x28] sm:$0xff]
        %v696 = vld [vmem:[#allocation10 + $0x30] sm:$0xff]
        %v697 = vld [vmem:[#allocation10 + $0x38] sm:$0xff]
        %v698 = vld [vmem:[%s8] sm:$0x1]
        %v700 = vperm.slane %v698, 0
        %v703 = vsel %vm571, %v687, 0
        %v706 = vsel %vm571, %v688, 0
        %v709 = vsel %vm571, %v689, 0
        %711 = vmatpush.msra.mxu0 0.0
        %712 = vmatpush.msra.mxu0 0.0
        %713 = vmatpush.msra.mxu0 0.0
        %714 = vmatpush.msra.mxu0 0.0
        %715 = vmatpush.msra.mxu0 0.0
        %716 = vmatpush.msra.mxu0 0.0
        %717 = vmatpush.msra.mxu0 0.0
        %718 = vmatpush.msra.mxu0 0.0
        %719 = vmatpush.msra.mxu0 %v697
        %720 = vmatpush.msra.mxu0 %v696
        %721 = vmatpush.msra.mxu0 %v695
        %722 = vmatpush.msra.mxu0 %v694
        %723 = vmatpush.msra.mxu0 %v693
        %724 = vmatpush.msra.mxu0 %v692
        %725 = vmatpush.msra.mxu0 %v691
        %726 = vmatpush.msra.mxu0 %v690
        %727 = vmatmul.f32.gmra.mxu0 %v703
        %v728 = vpop.f32.mrf.mxu0
        %v729 = vadd.f32 %v700, %v728
        %730 = vmatmul.f32.gmra.mxu0 %v706
        %v731 = vpop.f32.mrf.mxu0
        %v732 = vadd.f32 %v700, %v731
        %733 = vmatmul.f32.gmra.mxu0 %v709
        %v734 = vpop.f32.mrf.mxu0
        %v735 = vadd.f32 %v700, %v734
        %736 = vdwg.mxu0
        %v737 = vmax.f32 %v729, 0.0
        %v738 = vmax.f32 %v732, 0.0
        %v739 = vmax.f32 %v735, 0.0
        %v740 = vld [vmem:[#allocation11] sm:$0xff]
        %v741 = vld [vmem:[#allocation11 + $0x8] sm:$0xff]
        %v742 = vld [vmem:[#allocation11 + $0x10] sm:$0xff]
        %v743 = vld [vmem:[#allocation11 + $0x18] sm:$0xff]
        %v744 = vld [vmem:[#allocation11 + $0x20] sm:$0xff]
        %v745 = vld [vmem:[#allocation11 + $0x28] sm:$0xff]
        %v746 = vld [vmem:[#allocation11 + $0x30] sm:$0xff]
        %v747 = vld [vmem:[#allocation11 + $0x38] sm:$0xff]
        %v748 = vld [vmem:[%s10] sm:$0x1]
        %v750 = vperm.slane %v748, 0
        %v753 = vsel %vm571, %v737, 0
        %v756 = vsel %vm571, %v738, 0
        %v759 = vsel %vm571, %v739, 0
        %761 = vmatpush.msra.mxu0 0.0
        %762 = vmatpush.msra.mxu0 0.0
        %763 = vmatpush.msra.mxu0 0.0
        %764 = vmatpush.msra.mxu0 0.0
        %765 = vmatpush.msra.mxu0 0.0
        %766 = vmatpush.msra.mxu0 0.0
        %767 = vmatpush.msra.mxu0 0.0
        %768 = vmatpush.msra.mxu0 0.0
        %769 = vmatpush.msra.mxu0 %v747
        %770 = vmatpush.msra.mxu0 %v746
        %771 = vmatpush.msra.mxu0 %v745
        %772 = vmatpush.msra.mxu0 %v744
        %773 = vmatpush.msra.mxu0 %v743
        %774 = vmatpush.msra.mxu0 %v742
        %775 = vmatpush.msra.mxu0 %v741
        %776 = vmatpush.msra.mxu0 %v740
        %777 = vmatmul.f32.gmra.mxu0 %v753
        %v778 = vpop.f32.mrf.mxu0
        %v779 = vadd.f32 %v750, %v778
        %780 = vmatmul.f32.gmra.mxu0 %v756
        %v781 = vpop.f32.mrf.mxu0
        %v782 = vadd.f32 %v750, %v781
        %783 = vmatmul.f32.gmra.mxu0 %v759
        %v784 = vpop.f32.mrf.mxu0
        %v785 = vadd.f32 %v750, %v784
        %786 = vdwg.mxu0
        %v787 = vtanh.pop %v779
        %v788 = vtanh.pop %v782
        %v789 = vtanh.pop %v785
        %790 = vst [vmem:[%s489] sm:$0xff] %v787
        %791 = vst [vmem:[%s489 + $0x8] sm:$0xff] %v788
        %792 = vst [vmem:[%s489 + $0x10] sm:$0xff] %v789
        %s793 = sand.u32 %s275, 1
        %s794 = scalar_lea.sflag [#allocation4], %s793
        %s795 = sand.u32 %s275, 1
        %s796 = smul.addr %s795, 24
        %s797 = scalar_lea.vmem [#allocation13], %s796
        // Predicated region
        $region89: #{tpu_custom_call.1} parent=63 // pred_check
          %p798 = pneg %p285
        $region90: #{tpu_custom_call.1} parent=63 // pred_check_branch
          %800 = sbr.rel (%p798) target = $region92
        $region91: #{tpu_custom_call.1} parent=63 // pred_region
          %s801 = smul.u32 3, %s31
          %803 = vsyncadd %s794, 0
          %s804 = smul.addr %s801, 8
          %s805 = scalar_lea.hbm %s11, %s804
          %s806 = sshll.u32 %s797, 4
          %s807 = int_to_ptr.vmem [resolvable:$true] %s806
          %s808 = sshll.u32 %s805, 4
          %s809 = int_to_ptr.hbm [resolvable:$true] %s808
          %814 = dma.vmem_to_hbm [thread:$0]  %s807, 384, %s809, %s794, 128, 128, 8
        $region92: #{tpu_custom_call.1} parent=63 // pred_fallthru
          _
      $region64: #{tpu_custom_call.1} parent=5 // pred_fallthru
        _
      %p815 = scmp.le.s32.totalorder 2, %s26
      // Predicated region
      $region93: #{tpu_custom_call.1} parent=5 // pred_check
        %p816 = pneg %p815
      $region94: #{tpu_custom_call.1} parent=5 // pred_check_branch
        %818 = sbr.rel (%p816) target = $region96
      $region95: #{tpu_custom_call.1} parent=5 // pred_region
        %s819 = ssub.s32 %s26, 2
        // Predicated region
        $region97: #{tpu_custom_call.1} parent=95 // pred_check
          %p820 = pneg %p291
        $region98: #{tpu_custom_call.1} parent=95 // pred_check_branch
          %822 = sbr.rel (%p820) target = $region100
        $region99: #{tpu_custom_call.1} parent=95 // pred_region
          %s823 = sand.u32 %s276, 1
          %s824 = scalar_lea.sflag [#allocation4], %s823
          %s825 = sand.u32 %s276, 1
          %s826 = smul.addr %s825, 24
          %s827 = scalar_lea.vmem [#allocation13], %s826
          %829 = dma.done %s824, 384
        $region100: #{tpu_custom_call.1} parent=95 // pred_fallthru
          _
      $region96: #{tpu_custom_call.1} parent=5 // pred_fallthru
        _
    $region6: #{tpu_custom_call.1} parent=1 // loop_footer
      %s30 = sadd.s32 1, %s26
    $region7: #{tpu_custom_call.1} parent=1 // loop_footer_branch
      %25 = sbr.rel target = $region3
    $region8: #{tpu_custom_call.1} parent=1 // loop_exit
      _
    %830 = vsyncpa [#allocation3], 1
    %s831 = scalar_lea.sflag [#allocation3], 1
    %832 = vsyncpa %s831, 1
    %833 = vsyncpa [#allocation6], 1
    %834 = vsyncpa [#allocation9], 1
    %835 = vsyncpa [#allocation12], 1
    %836 = vsyncpa [#allocation4], 1
    %s837 = scalar_lea.sflag [#allocation4], 1
    %838 = vsyncpa %s837, 1

</llo_original>
